<compile_context>
chip_gen: v6e
topology: v6e:2x2x1
jax: 0.10.0
libtpu: 0.0.40
codegen_flags: <defaults>
</compile_context>

<pallas_src>
import math

import jax
import jax.numpy as jnp
from jax.experimental import pallas as pl
from jax.experimental.pallas import tpu as pltpu

HIDDEN = 512
LEAKY_SLOPE = 0.2
LANE = 128


def _round_up(n, m):
    return ((n + m - 1) // m) * m


def _leaky_relu(x, slope=LEAKY_SLOPE):
    return jnp.where(x > 0, x, slope * x)


def nnbody_kernel(x_ref, w1_ref, b1_ref, w2_ref, b2_ref, w3_ref, b3_ref, o_ref):
    # Matmuls take bf16 inputs (native MXU rate) and accumulate in f32.
    # The bias-add / LeakyReLU epilogue stays in f32 (VPU-native on all gens).
    h = jnp.dot(x_ref[...], w1_ref[...], preferred_element_type=jnp.float32)
    h = _leaky_relu(h + b1_ref[...])

    h = jnp.dot(h.astype(jnp.bfloat16), w2_ref[...],
                preferred_element_type=jnp.float32)
    h = _leaky_relu(h + b2_ref[...])

    h = jnp.dot(h.astype(jnp.bfloat16), w3_ref[...],
                preferred_element_type=jnp.float32)
    h = _leaky_relu(h + b3_ref[...])

    o_ref[...] = h.astype(o_ref.dtype)


def nnbody_forward(x, params, *, tile_batch=256):
    """x: [B, input_size] float32. params: w1/w2/w3 bf16 [in,out], b1/b2/b3 f32 [1,out]."""
    B, input_size = x.shape
    output_size = params["w3"].shape[1]

    # ---- pick the batch tile ------------------------------------------------
    tb = min(tile_batch, _round_up(B, 8))            # never bigger than the batch
    if B >= 16:
        # keep >= 2 grid steps so the "parallel" axis can be split across
        # v7x's two TensorCores (no-op for single-TC v5e/v6e).
        tb = min(tb, _round_up(-(-B // 2), 8))
    B_pad = _round_up(B, tb)

    # ---- lane-dense zero padding of the feature dims -------------------------
    in_pad = _round_up(input_size, LANE)
    out_pad = _round_up(output_size, LANE)

    x_p = jnp.zeros((B_pad, in_pad), jnp.bfloat16)
    x_p = x_p.at[:B, :input_size].set(x.astype(jnp.bfloat16))

    w1 = jnp.zeros((in_pad, HIDDEN), jnp.bfloat16)
    w1 = w1.at[:input_size, :].set(params["w1"].astype(jnp.bfloat16))
    w2 = params["w2"].astype(jnp.bfloat16)
    w3 = jnp.zeros((HIDDEN, out_pad), jnp.bfloat16)
    w3 = w3.at[:, :output_size].set(params["w3"].astype(jnp.bfloat16))

    b1 = params["b1"].astype(jnp.float32)
    b2 = params["b2"].astype(jnp.float32)
    b3 = jnp.zeros((1, out_pad), jnp.float32)
    b3 = b3.at[:, :output_size].set(params["b3"].astype(jnp.float32))

    grid = (B_pad // tb,)
    full = lambda shape: pl.BlockSpec(shape, lambda i: (0, 0))  # weights resident

    out = pl.pallas_call(
        nnbody_kernel,
        out_shape=jax.ShapeDtypeStruct((B_pad, out_pad), jnp.float32),
        grid_spec=pltpu.PrefetchScalarGridSpec(
            num_scalar_prefetch=0,
            grid=grid,
            in_specs=[
                pl.BlockSpec((tb, in_pad), lambda i: (i, 0)),  # x tile
                full((in_pad, HIDDEN)),                        # w1
                full((1, HIDDEN)),                             # b1
                full((HIDDEN, HIDDEN)),                        # w2
                full((1, HIDDEN)),                             # b2
                full((HIDDEN, out_pad)),                       # w3
                full((1, out_pad)),                            # b3
            ],
            out_specs=pl.BlockSpec((tb, out_pad), lambda i: (i, 0)),
        ),
        compiler_params=pltpu.CompilerParams(
            dimension_semantics=("parallel",),
            vmem_limit_bytes=32 * 1024 * 1024,
        ),
    )(x_p, w1, b1, w2, b2, w3, b3)

    # slice off the batch / lane padding
    return out[:B, :output_size]


def init_params(key, input_size, output_size):
    """Mirrors nn.Linear default init (uniform +-1/sqrt(fan_in)).
    Weights stored [in, out] (transpose of PyTorch's [out, in]), in bfloat16."""
    ks = jax.random.split(key, 6)

    def linear(kw, kb, fan_in, fan_out):
        bound = 1.0 / math.sqrt(fan_in)
        w = jax.random.uniform(kw, (fan_in, fan_out), jnp.float32, -bound, bound)
        b = jax.random.uniform(kb, (1, fan_out), jnp.float32, -bound, bound)
        return w.astype(jnp.bfloat16), b

    w1, b1 = linear(ks[0], ks[1], input_size, HIDDEN)
    w2, b2 = linear(ks[2], ks[3], HIDDEN, HIDDEN)
    w3, b3 = linear(ks[4], ks[5], HIDDEN, output_size)
    return {"w1": w1, "b1": b1, "w2": w2, "b2": b2, "w3": w3, "b3": b3}


def nnbody_reference(x, p):
    """Pure-JAX reference with the same numerics (bf16 matmul inputs, f32 acc)."""
    h = x
    for wk, bk in (("w1", "b1"), ("w2", "b2"), ("w3", "b3")):
        h = _leaky_relu(
            jnp.dot(h.astype(jnp.bfloat16), p[wk],
                    preferred_element_type=jnp.float32) + p[bk])
    return h


if __name__ == "__main__":
    batch = 16
    input_size = 32
    output_size = 64

    key = jax.random.PRNGKey(0)
    k_x, k_p = jax.random.split(key)

    x = jax.random.normal(k_x, (batch, input_size), jnp.float32)
    params = init_params(k_p, input_size, output_size)

    out = jax.block_until_ready(nnbody_forward(x, params))
    ref = nnbody_reference(x, params)

    assert out.shape == (batch, output_size), out.shape
    assert jnp.allclose(out, ref, atol=1e-3, rtol=1e-3), \
        float(jnp.max(jnp.abs(out - ref)))

    print("KERNEL_OK")
</pallas_src>

<mosaic_0001>
module attributes {stable_mosaic.version = 11 : i64} {
  func.func @nnbody_kernel(%arg0: i32, %arg1: memref<8x128xbf16, #tpu.memory_space<vmem>>, %arg2: memref<128x512xbf16, #tpu.memory_space<vmem>>, %arg3: memref<1x512xf32, #tpu.memory_space<vmem>>, %arg4: memref<512x512xbf16, #tpu.memory_space<vmem>>, %arg5: memref<1x512xf32, #tpu.memory_space<vmem>>, %arg6: memref<512x128xbf16, #tpu.memory_space<vmem>>, %arg7: memref<1x128xf32, #tpu.memory_space<vmem>>, %arg8: memref<8x128xf32, #tpu.memory_space<vmem>>) attributes {dimension_semantics = [#tpu.dimension_semantics<parallel>], iteration_bounds = array<i64: 2>, scalar_prefetch = 0 : i64, scratch_operands = 0 : i64, tpu.core_type = #tpu.core_type<tc>, window_params = [{transform_indices = @transform_0, window_bounds = array<i64: 8, 128>}, {pipeline_mode = #tpu.pipeline_mode<synchronous>, transform_indices = @transform_1, window_bounds = array<i64: 128, 512>}, {pipeline_mode = #tpu.pipeline_mode<synchronous>, transform_indices = @transform_2, window_bounds = array<i64: 1, 512>}, {pipeline_mode = #tpu.pipeline_mode<synchronous>, transform_indices = @transform_3, window_bounds = array<i64: 512, 512>}, {pipeline_mode = #tpu.pipeline_mode<synchronous>, transform_indices = @transform_4, window_bounds = array<i64: 1, 512>}, {pipeline_mode = #tpu.pipeline_mode<synchronous>, transform_indices = @transform_5, window_bounds = array<i64: 512, 128>}, {pipeline_mode = #tpu.pipeline_mode<synchronous>, transform_indices = @transform_6, window_bounds = array<i64: 1, 128>}, {transform_indices = @transform_7, window_bounds = array<i64: 8, 128>}]} {
    %c0 = arith.constant 0 : index
    %c0_0 = arith.constant 0 : index
    %0 = vector.load %arg1[%c0, %c0_0] : memref<8x128xbf16, #tpu.memory_space<vmem>>, vector<8x128xbf16>
    %c0_1 = arith.constant 0 : index
    %c0_2 = arith.constant 0 : index
    %1 = vector.load %arg2[%c0_1, %c0_2] : memref<128x512xbf16, #tpu.memory_space<vmem>>, vector<128x512xbf16>
    %cst = arith.constant dense<0.000000e+00> : vector<8x512xf32>
    %2 = tpu.matmul %0, %1, %cst {dimension_numbers = #tpu.dot_dimension_numbers<[1], [0], [0], [1], [0, 0, 1, 1], [], []>} : vector<8x128xbf16>, vector<128x512xbf16>, vector<8x512xf32> -> vector<8x512xf32>
    %c0_3 = arith.constant 0 : index
    %c0_4 = arith.constant 0 : index
    %3 = vector.load %arg3[%c0_3, %c0_4] : memref<1x512xf32, #tpu.memory_space<vmem>>, vector<1x512xf32>
    %4 = vector.broadcast %3 : vector<1x512xf32> to vector<8x512xf32>
    %5 = arith.addf %2, %4 : vector<8x512xf32>
    %cst_5 = arith.constant 0.000000e+00 : f32
    %6 = vector.broadcast %cst_5 : f32 to vector<8x512xf32>
    %7 = arith.cmpf ogt, %5, %6 : vector<8x512xf32>
    %cst_6 = arith.constant 2.000000e-01 : f32
    %8 = vector.broadcast %cst_6 : f32 to vector<8x512xf32>
    %9 = arith.mulf %8, %5 : vector<8x512xf32>
    %10 = arith.select %7, %5, %9 : vector<8x512xi1>, vector<8x512xf32>
    %11 = arith.truncf %10 : vector<8x512xf32> to vector<8x512xbf16>
    %c0_7 = arith.constant 0 : index
    %c0_8 = arith.constant 0 : index
    %12 = vector.load %arg4[%c0_7, %c0_8] : memref<512x512xbf16, #tpu.memory_space<vmem>>, vector<512x512xbf16>
    %cst_9 = arith.constant dense<0.000000e+00> : vector<8x512xf32>
    %13 = tpu.matmul %11, %12, %cst_9 {dimension_numbers = #tpu.dot_dimension_numbers<[1], [0], [0], [1], [0, 0, 1, 1], [], []>} : vector<8x512xbf16>, vector<512x512xbf16>, vector<8x512xf32> -> vector<8x512xf32>
    %c0_10 = arith.constant 0 : index
    %c0_11 = arith.constant 0 : index
    %14 = vector.load %arg5[%c0_10, %c0_11] : memref<1x512xf32, #tpu.memory_space<vmem>>, vector<1x512xf32>
    %15 = vector.broadcast %14 : vector<1x512xf32> to vector<8x512xf32>
    %16 = arith.addf %13, %15 : vector<8x512xf32>
    %cst_12 = arith.constant 0.000000e+00 : f32
    %17 = vector.broadcast %cst_12 : f32 to vector<8x512xf32>
    %18 = arith.cmpf ogt, %16, %17 : vector<8x512xf32>
    %cst_13 = arith.constant 2.000000e-01 : f32
    %19 = vector.broadcast %cst_13 : f32 to vector<8x512xf32>
    %20 = arith.mulf %19, %16 : vector<8x512xf32>
    %21 = arith.select %18, %16, %20 : vector<8x512xi1>, vector<8x512xf32>
    %22 = arith.truncf %21 : vector<8x512xf32> to vector<8x512xbf16>
    %c0_14 = arith.constant 0 : index
    %c0_15 = arith.constant 0 : index
    %23 = vector.load %arg6[%c0_14, %c0_15] : memref<512x128xbf16, #tpu.memory_space<vmem>>, vector<512x128xbf16>
    %cst_16 = arith.constant dense<0.000000e+00> : vector<8x128xf32>
    %24 = tpu.matmul %22, %23, %cst_16 {dimension_numbers = #tpu.dot_dimension_numbers<[1], [0], [0], [1], [0, 0, 1, 1], [], []>} : vector<8x512xbf16>, vector<512x128xbf16>, vector<8x128xf32> -> vector<8x128xf32>
    %c0_17 = arith.constant 0 : index
    %c0_18 = arith.constant 0 : index
    %25 = vector.load %arg7[%c0_17, %c0_18] : memref<1x128xf32, #tpu.memory_space<vmem>>, vector<1x128xf32>
    %26 = vector.broadcast %25 : vector<1x128xf32> to vector<8x128xf32>
    %27 = arith.addf %24, %26 : vector<8x128xf32>
    %cst_19 = arith.constant 0.000000e+00 : f32
    %28 = vector.broadcast %cst_19 : f32 to vector<8x128xf32>
    %29 = arith.cmpf ogt, %27, %28 : vector<8x128xf32>
    %cst_20 = arith.constant 2.000000e-01 : f32
    %30 = vector.broadcast %cst_20 : f32 to vector<8x128xf32>
    %31 = arith.mulf %30, %27 : vector<8x128xf32>
    %32 = arith.select %29, %27, %31 : vector<8x128xi1>, vector<8x128xf32>
    %c0_21 = arith.constant 0 : index
    %c0_22 = arith.constant 0 : index
    %33 = vector.load %arg8[%c0_21, %c0_22] : memref<8x128xf32, #tpu.memory_space<vmem>>, vector<8x128xf32>
    tpu.vector_store %arg8[%c0_21, %c0_22], %32 {strides = array<i32>} : memref<8x128xf32, #tpu.memory_space<vmem>>, vector<8x128xf32>,
    return
  }
  func.func @transform_0(%arg0: i32) -> (i32, i32) {
    %c0_i32 = arith.constant 0 : i32
    %c0_i32_0 = arith.constant 0 : i32
    return %arg0, %c0_i32 : i32, i32
  }
  func.func @transform_1(%arg0: i32) -> (i32, i32) {
    %c0_i32 = arith.constant 0 : i32
    %c0_i32_0 = arith.constant 0 : i32
    %c0_i32_1 = arith.constant 0 : i32
    return %c0_i32, %c0_i32_0 : i32, i32
  }
  func.func @transform_2(%arg0: i32) -> (i32, i32) {
    %c0_i32 = arith.constant 0 : i32
    %c0_i32_0 = arith.constant 0 : i32
    %c0_i32_1 = arith.constant 0 : i32
    return %c0_i32, %c0_i32_0 : i32, i32
  }
  func.func @transform_3(%arg0: i32) -> (i32, i32) {
    %c0_i32 = arith.constant 0 : i32
    %c0_i32_0 = arith.constant 0 : i32
    %c0_i32_1 = arith.constant 0 : i32
    return %c0_i32, %c0_i32_0 : i32, i32
  }
  func.func @transform_4(%arg0: i32) -> (i32, i32) {
    %c0_i32 = arith.constant 0 : i32
    %c0_i32_0 = arith.constant 0 : i32
    %c0_i32_1 = arith.constant 0 : i32
    return %c0_i32, %c0_i32_0 : i32, i32
  }
  func.func @transform_5(%arg0: i32) -> (i32, i32) {
    %c0_i32 = arith.constant 0 : i32
    %c0_i32_0 = arith.constant 0 : i32
    %c0_i32_1 = arith.constant 0 : i32
    return %c0_i32, %c0_i32_0 : i32, i32
  }
  func.func @transform_6(%arg0: i32) -> (i32, i32) {
    %c0_i32 = arith.constant 0 : i32
    %c0_i32_0 = arith.constant 0 : i32
    %c0_i32_1 = arith.constant 0 : i32
    return %c0_i32, %c0_i32_0 : i32, i32
  }
  func.func @transform_7(%arg0: i32) -> (i32, i32) {
    %c0_i32 = arith.constant 0 : i32
    %c0_i32_0 = arith.constant 0 : i32
    return %arg0, %c0_i32 : i32, i32
  }
}

</mosaic_0001>

<llo_original>
// kernel: tpu_custom_call.1
$region0: #{tpu_custom_call.1}
  #allocation0 [shape = 'u32[]', space=smem, size = 0x4, offset = 0x4, fixed_abs, tag = 'smem constant byte address 0x4 - core index']
  #allocation1 [shape = 'u32[144,128]{1,0:T(1,128)}', space=vmem, size = 0x12000, scoped, tag = 'internal scratch']
  %s0 = inlined_call_operand.hbm [shape: bf16[16,128], index: 0, kind: input, shape index: {}]
  %s1 = inlined_call_operand.hbm [shape: bf16[128,512], index: 1, kind: input, shape index: {}]
  %s2 = inlined_call_operand.hbm [shape: f32[1,512], index: 2, kind: input, shape index: {}]
  %s3 = inlined_call_operand.hbm [shape: bf16[512,512], index: 3, kind: input, shape index: {}]
  %s4 = inlined_call_operand.vmem [shape: f32[1,512], index: 4, kind: input, shape index: {}]
  %s5 = inlined_call_operand.hbm [shape: bf16[512,128], index: 5, kind: input, shape index: {}]
  %s6 = inlined_call_operand.vmem [shape: f32[1,128], index: 6, kind: input, shape index: {}]
  %s7 = inlined_call_operand.hbm [shape: f32[16,128], index: 7, kind: output, shape index: {}]
  %s8 = sld [smem:[#allocation0]]
  $region81: #{tpu_custom_call.1} parent=0
    _
  %s10 = ssub.s32 1, %s8
  %s11 = scalar_select 0, %s10, %s8
  $region1: #{tpu_custom_call.1} parent=0
    #allocation2 [shape = 'u8[4096]{0}', space=vmem, size = 0x1000, scoped, tag = 'input window, operand 0']
    #allocation3 [shape = 's32[2]{0}', space=sflag, size = 0x8, scoped, tag = 'scoped memory for tpu_custom_call.1']
    #allocation4 [shape = 's32[2]{0}', space=sflag, size = 0x8, scoped, tag = 'scoped memory for tpu_custom_call.1']
    #allocation5 [shape = 'u8[131072]{0}', space=vmem, size = 0x20000, scoped, tag = 'input window, operand 1, single buffered']
    #allocation6 [shape = 's32[1]{0}', space=sflag, size = 0x4, scoped, tag = 'scoped memory for tpu_custom_call.1']
    #allocation7 [shape = 'u8[2048]{0}', space=vmem, size = 0x800, scoped, tag = 'input window, operand 2, single buffered']
    #allocation8 [shape = 'u8[524288]{0}', space=vmem, size = 0x80000, scoped, tag = 'input window, operand 3, single buffered']
    #allocation9 [shape = 's32[1]{0}', space=sflag, size = 0x4, scoped, tag = 'scoped memory for tpu_custom_call.1']
    #allocation10 [shape = 'u8[131072]{0}', space=vmem, size = 0x20000, scoped, tag = 'input window, operand 5, single buffered']
    #allocation11 [shape = 'u8[8192]{0}', space=vmem, size = 0x2000, scoped, tag = 'output window, operand 0']
    %12 = vsyncpa [#allocation3], 0
    %s13 = scalar_lea.sflag [#allocation3], 1
    %14 = vsyncpa %s13, 0
    %15 = vsyncpa [#allocation6], 0
    %16 = vsyncpa [#allocation9], 0
    %17 = vsyncpa [#allocation4], 0
    %s18 = scalar_lea.sflag [#allocation4], 1
    %19 = vsyncpa %s18, 0
    loop: start=0, step=1, limit=4
    $region2: #{tpu_custom_call.1} parent=1 // loop_pre_header
      _
    $region3: #{tpu_custom_call.1} parent=1 // loop_header
      %s21 = sphi 0, %s25
      %p22 = scmp.ge.s32.totalorder %s21, 4
      %s31 = sphi 0, %s33
      %s34 = sphi 0, %s31
      %s35 = sphi 0, %s34
      %s51 = sphi 0, %s35
      %s55 = sphi 0, %s55
      %s57 = sphi 0, %s55
      %s58 = sphi 0, %s57
      %s72 = sphi 0, %s58
      %s76 = sphi 0, %s76
      %s78 = sphi 0, %s76
      %s79 = sphi 0, %s78
      %s93 = sphi 0, %s79
      %s97 = sphi 0, %s97
      %s99 = sphi 0, %s97
      %s100 = sphi 0, %s99
      %s114 = sphi 0, %s100
      %s118 = sphi 0, %s118
      %s120 = sphi 0, %s118
      %s121 = sphi 0, %s120
      %s135 = sphi 0, %s121
      %s139 = sphi 0, %s139
      %s141 = sphi 0, %s139
      %s142 = sphi 0, %s141
      %s156 = sphi 0, %s142
      %s160 = sphi 0, %s160
      %s162 = sphi 0, %s160
      %s163 = sphi 0, %s162
      %s177 = sphi 0, %s163
      %s183 = sphi 0, %s185
      %s186 = sphi 0, %s183
      %s187 = sphi 0, %s186
      %s203 = sphi 0, %s187
    $region4: #{tpu_custom_call.1} parent=1 // loop_header_branch
      %24 = sbr.rel (%p22) target = $region8
    $region5: #{tpu_custom_call.1} parent=1 // loop_body
      %s26 = ssub.s32 %s21, 1
      %s27 = ssub.s32 %s21, 2
      %s28 = sadd.s32 %s21, 1
      %s29 = ssub.s32 %s21, %s28
      %p30 = scmp.eq.s32.totalorder %s29, 0
      %s32 = sadd.s32 %s31, 1
      %s33 = scalar_select %p30, %s31, %s32
      %p36 = pneg %p30
      %p37 = scmp.eq.s32.totalorder %s21, 1
      %p38 = por %p36, %p37
      %p39 = scmp.ne.s32.totalorder %s31, %s34
      %p40 = scmp.eq.s32.totalorder %s21, 0
      %p41 = por %p39, %p40
      %p42 = scmp.ne.s32.totalorder %s31, %s34
      %p43 = scmp.eq.s32.totalorder %s26, 1
      %p44 = por %p42, %p43
      %p45 = scmp.ne.s32.totalorder %s34, %s35
      %p46 = scmp.eq.s32.totalorder %s26, 0
      %p47 = por %p45, %p46
      %p48 = scmp.ne.s32.totalorder %s34, %s35
      %p49 = scmp.eq.s32.totalorder %s27, 1
      %p50 = por %p48, %p49
      %p52 = scmp.ne.s32.totalorder %s35, %s51
      %p53 = scmp.eq.s32.totalorder %s27, 0
      %p54 = por %p52, %p53
      %s56 = sadd.s32 %s55, 1
      %p59 = scmp.eq.s32.totalorder %s21, 1
      %p60 = scmp.ne.s32.totalorder %s55, %s57
      %p61 = scmp.eq.s32.totalorder %s21, 0
      %p62 = por %p60, %p61
      %p63 = scmp.ne.s32.totalorder %s55, %s57
      %p64 = scmp.eq.s32.totalorder %s26, 1
      %p65 = por %p63, %p64
      %p66 = scmp.ne.s32.totalorder %s57, %s58
      %p67 = scmp.eq.s32.totalorder %s26, 0
      %p68 = por %p66, %p67
      %p69 = scmp.ne.s32.totalorder %s57, %s58
      %p70 = scmp.eq.s32.totalorder %s27, 1
      %p71 = por %p69, %p70
      %p73 = scmp.ne.s32.totalorder %s58, %s72
      %p74 = scmp.eq.s32.totalorder %s27, 0
      %p75 = por %p73, %p74
      %s77 = sadd.s32 %s76, 1
      %p80 = scmp.eq.s32.totalorder %s21, 1
      %p81 = scmp.ne.s32.totalorder %s76, %s78
      %p82 = scmp.eq.s32.totalorder %s21, 0
      %p83 = por %p81, %p82
      %p84 = scmp.ne.s32.totalorder %s76, %s78
      %p85 = scmp.eq.s32.totalorder %s26, 1
      %p86 = por %p84, %p85
      %p87 = scmp.ne.s32.totalorder %s78, %s79
      %p88 = scmp.eq.s32.totalorder %s26, 0
      %p89 = por %p87, %p88
      %p90 = scmp.ne.s32.totalorder %s78, %s79
      %p91 = scmp.eq.s32.totalorder %s27, 1
      %p92 = por %p90, %p91
      %p94 = scmp.ne.s32.totalorder %s79, %s93
      %p95 = scmp.eq.s32.totalorder %s27, 0
      %p96 = por %p94, %p95
      %s98 = sadd.s32 %s97, 1
      %p101 = scmp.eq.s32.totalorder %s21, 1
      %p102 = scmp.ne.s32.totalorder %s97, %s99
      %p103 = scmp.eq.s32.totalorder %s21, 0
      %p104 = por %p102, %p103
      %p105 = scmp.ne.s32.totalorder %s97, %s99
      %p106 = scmp.eq.s32.totalorder %s26, 1
      %p107 = por %p105, %p106
      %p108 = scmp.ne.s32.totalorder %s99, %s100
      %p109 = scmp.eq.s32.totalorder %s26, 0
      %p110 = por %p108, %p109
      %p111 = scmp.ne.s32.totalorder %s99, %s100
      %p112 = scmp.eq.s32.totalorder %s27, 1
      %p113 = por %p111, %p112
      %p115 = scmp.ne.s32.totalorder %s100, %s114
      %p116 = scmp.eq.s32.totalorder %s27, 0
      %p117 = por %p115, %p116
      %s119 = sadd.s32 %s118, 1
      %p122 = scmp.eq.s32.totalorder %s21, 1
      %p123 = scmp.ne.s32.totalorder %s118, %s120
      %p124 = scmp.eq.s32.totalorder %s21, 0
      %p125 = por %p123, %p124
      %p126 = scmp.ne.s32.totalorder %s118, %s120
      %p127 = scmp.eq.s32.totalorder %s26, 1
      %p128 = por %p126, %p127
      %p129 = scmp.ne.s32.totalorder %s120, %s121
      %p130 = scmp.eq.s32.totalorder %s26, 0
      %p131 = por %p129, %p130
      %p132 = scmp.ne.s32.totalorder %s120, %s121
      %p133 = scmp.eq.s32.totalorder %s27, 1
      %p134 = por %p132, %p133
      %p136 = scmp.ne.s32.totalorder %s121, %s135
      %p137 = scmp.eq.s32.totalorder %s27, 0
      %p138 = por %p136, %p137
      %s140 = sadd.s32 %s139, 1
      %p143 = scmp.eq.s32.totalorder %s21, 1
      %p144 = scmp.ne.s32.totalorder %s139, %s141
      %p145 = scmp.eq.s32.totalorder %s21, 0
      %p146 = por %p144, %p145
      %p147 = scmp.ne.s32.totalorder %s139, %s141
      %p148 = scmp.eq.s32.totalorder %s26, 1
      %p149 = por %p147, %p148
      %p150 = scmp.ne.s32.totalorder %s141, %s142
      %p151 = scmp.eq.s32.totalorder %s26, 0
      %p152 = por %p150, %p151
      %p153 = scmp.ne.s32.totalorder %s141, %s142
      %p154 = scmp.eq.s32.totalorder %s27, 1
      %p155 = por %p153, %p154
      %p157 = scmp.ne.s32.totalorder %s142, %s156
      %p158 = scmp.eq.s32.totalorder %s27, 0
      %p159 = por %p157, %p158
      %s161 = sadd.s32 %s160, 1
      %p164 = scmp.eq.s32.totalorder %s21, 1
      %p165 = scmp.ne.s32.totalorder %s160, %s162
      %p166 = scmp.eq.s32.totalorder %s21, 0
      %p167 = por %p165, %p166
      %p168 = scmp.ne.s32.totalorder %s160, %s162
      %p169 = scmp.eq.s32.totalorder %s26, 1
      %p170 = por %p168, %p169
      %p171 = scmp.ne.s32.totalorder %s162, %s163
      %p172 = scmp.eq.s32.totalorder %s26, 0
      %p173 = por %p171, %p172
      %p174 = scmp.ne.s32.totalorder %s162, %s163
      %p175 = scmp.eq.s32.totalorder %s27, 1
      %p176 = por %p174, %p175
      %p178 = scmp.ne.s32.totalorder %s163, %s177
      %p179 = scmp.eq.s32.totalorder %s27, 0
      %p180 = por %p178, %p179
      %s181 = ssub.s32 %s21, %s28
      %p182 = scmp.eq.s32.totalorder %s181, 0
      %s184 = sadd.s32 %s183, 1
      %s185 = scalar_select %p182, %s183, %s184
      %p188 = pneg %p182
      %p189 = scmp.eq.s32.totalorder %s21, 1
      %p190 = por %p188, %p189
      %p191 = scmp.ne.s32.totalorder %s183, %s186
      %p192 = scmp.eq.s32.totalorder %s21, 0
      %p193 = por %p191, %p192
      %p194 = scmp.ne.s32.totalorder %s183, %s186
      %p195 = scmp.eq.s32.totalorder %s26, 1
      %p196 = por %p194, %p195
      %p197 = scmp.ne.s32.totalorder %s186, %s187
      %p198 = scmp.eq.s32.totalorder %s26, 0
      %p199 = por %p197, %p198
      %p200 = scmp.ne.s32.totalorder %s186, %s187
      %p201 = scmp.eq.s32.totalorder %s27, 1
      %p202 = por %p200, %p201
      %p204 = scmp.ne.s32.totalorder %s187, %s203
      %p205 = scmp.eq.s32.totalorder %s27, 0
      %p206 = por %p204, %p205
      %p207 = scmp.le.s32.totalorder 1, %s21
      %p208 = scmp.lt.s32.totalorder %s21, 3
      %p209 = pnand %p207, %p208
      %p210 = pneg %p209
      // Predicated region
      $region9: #{tpu_custom_call.1} parent=5 // pred_check
        _
      $region10: #{tpu_custom_call.1} parent=5 // pred_check_branch
        %212 = sbr.rel (%p209) target = $region12
      $region11: #{tpu_custom_call.1} parent=5 // pred_region
        %s213 = ssub.s32 %s21, 1
        // Predicated region
        $region13: #{tpu_custom_call.1} parent=11 // pred_check
          %p214 = pneg %p68
        $region14: #{tpu_custom_call.1} parent=11 // pred_check_branch
          %216 = sbr.rel (%p214) target = $region16
        $region15: #{tpu_custom_call.1} parent=11 // pred_region
          %s218 = ssub.s32 4096, 4096
          %219 = vsyncadd [#allocation6], %s218
          %s220 = sshll.u32 [#allocation5], 4
          %s221 = int_to_ptr.vmem [resolvable:$true] %s220
          %226 = dma.hbm_to_vmem [thread:$0]  %s1, 4096, %s221, [#allocation6], 256, 256, 16
        $region16: #{tpu_custom_call.1} parent=11 // pred_fallthru
          _
        // Predicated region
        $region17: #{tpu_custom_call.1} parent=11 // pred_check
          %p227 = pneg %p89
        $region18: #{tpu_custom_call.1} parent=11 // pred_check_branch
          %229 = sbr.rel (%p227) target = $region20
        $region19: #{tpu_custom_call.1} parent=11 // pred_region
          %s231 = ssub.s32 64, 64
          %232 = vsyncadd [#allocation6], %s231
          %s234 = sshll.u32 [#allocation7], 4
          %s235 = int_to_ptr.vmem [resolvable:$true] %s234
          %237 = dma.hbm_to_vmem [thread:$0]  %s2, 64, %s235, [#allocation6]
        $region20: #{tpu_custom_call.1} parent=11 // pred_fallthru
          _
        // Predicated region
        $region21: #{tpu_custom_call.1} parent=11 // pred_check
          %p238 = pneg %p110
        $region22: #{tpu_custom_call.1} parent=11 // pred_check_branch
          %240 = sbr.rel (%p238) target = $region24
        $region23: #{tpu_custom_call.1} parent=11 // pred_region
          %s242 = ssub.s32 16384, 16384
          %243 = vsyncadd [#allocation9], %s242
          %s244 = sshll.u32 [#allocation8], 4
          %s245 = int_to_ptr.vmem [resolvable:$true] %s244
          %250 = dma.hbm_to_vmem [thread:$0]  %s3, 16384, %s245, [#allocation9], 256, 256, 16
        $region24: #{tpu_custom_call.1} parent=11 // pred_fallthru
          _
        // Predicated region
        $region25: #{tpu_custom_call.1} parent=11 // pred_check
          %p251 = pneg %p131
        $region26: #{tpu_custom_call.1} parent=11 // pred_check_branch
          %253 = sbr.rel (%p251) target = $region28
        $region27: #{tpu_custom_call.1} parent=11 // pred_region
          _
        $region28: #{tpu_custom_call.1} parent=11 // pred_fallthru
          _
        // Predicated region
        $region29: #{tpu_custom_call.1} parent=11 // pred_check
          %p254 = pneg %p152
        $region30: #{tpu_custom_call.1} parent=11 // pred_check_branch
          %256 = sbr.rel (%p254) target = $region32
        $region31: #{tpu_custom_call.1} parent=11 // pred_region
          %s258 = ssub.s32 4096, 4096
          %259 = vsyncadd [#allocation9], %s258
          %s260 = sshll.u32 [#allocation10], 4
          %s261 = int_to_ptr.vmem [resolvable:$true] %s260
          %266 = dma.hbm_to_vmem [thread:$0]  %s5, 4096, %s261, [#allocation9], 64, 64, 4
        $region32: #{tpu_custom_call.1} parent=11 // pred_fallthru
          _
        // Predicated region
        $region33: #{tpu_custom_call.1} parent=11 // pred_check
          %p267 = pneg %p173
        $region34: #{tpu_custom_call.1} parent=11 // pred_check_branch
          %269 = sbr.rel (%p267) target = $region36
        $region35: #{tpu_custom_call.1} parent=11 // pred_region
          _
        $region36: #{tpu_custom_call.1} parent=11 // pred_fallthru
          _
      $region12: #{tpu_custom_call.1} parent=5 // pred_fallthru
        _
      %p270 = scmp.lt.s32.totalorder %s21, 2
      // Predicated region
      $region37: #{tpu_custom_call.1} parent=5 // pred_check
        %p271 = pneg %p270
      $region38: #{tpu_custom_call.1} parent=5 // pred_check_branch
        %273 = sbr.rel (%p271) target = $region40
      $region39: #{tpu_custom_call.1} parent=5 // pred_region
        // Predicated region
        $region41: #{tpu_custom_call.1} parent=39 // pred_check
          %p274 = pneg %p41
        $region42: #{tpu_custom_call.1} parent=39 // pred_check_branch
          %276 = sbr.rel (%p274) target = $region44
        $region43: #{tpu_custom_call.1} parent=39 // pred_region
          %s277 = sand.u32 %s31, 1
          %s278 = scalar_lea.sflag [#allocation3], %s277
          %s279 = sand.u32 %s31, 1
          %s280 = smul.addr %s279, 4
          %s281 = scalar_lea.vmem [#allocation2], %s280
          %s283 = ssub.s32 64, 64
          %284 = vsyncadd %s278, %s283
          %s285 = smul.addr %s21, 64
          %s286 = scalar_lea.hbm %s0, %s285
          %s288 = sshll.u32 %s281, 4
          %s289 = int_to_ptr.vmem [resolvable:$true] %s288
          %291 = dma.hbm_to_vmem [thread:$0]  %s286, 64, %s289, %s278
        $region44: #{tpu_custom_call.1} parent=39 // pred_fallthru
          _
      $region40: #{tpu_custom_call.1} parent=5 // pred_fallthru
        _
      %p292 = scmp.le.s32.totalorder 1, %s21
      %p293 = scmp.lt.s32.totalorder %s21, 3
      %p294 = pnand %p292, %p293
      %p295 = pneg %p294
      // Predicated region
      $region45: #{tpu_custom_call.1} parent=5 // pred_check
        _
      $region46: #{tpu_custom_call.1} parent=5 // pred_check_branch
        %297 = sbr.rel (%p294) target = $region48
      $region47: #{tpu_custom_call.1} parent=5 // pred_region
        %s298 = ssub.s32 %s21, 1
        %s299 = sand.u32 %s34, 1
        %s300 = scalar_lea.sflag [#allocation3], %s299
        %s301 = sand.u32 %s34, 1
        %s302 = smul.addr %s301, 4
        %s303 = scalar_lea.vmem [#allocation2], %s302
        // Predicated region
        $region49: #{tpu_custom_call.1} parent=47 // pred_check
          %p304 = pneg %p47
        $region50: #{tpu_custom_call.1} parent=47 // pred_check_branch
          %306 = sbr.rel (%p304) target = $region52
        $region51: #{tpu_custom_call.1} parent=47 // pred_region
          %307 = dma.done %s300, 64
        $region52: #{tpu_custom_call.1} parent=47 // pred_fallthru
          _
        // Predicated region
        $region53: #{tpu_custom_call.1} parent=47 // pred_check
          %p308 = pneg %p68
        $region54: #{tpu_custom_call.1} parent=47 // pred_check_branch
          %310 = sbr.rel (%p308) target = $region56
        $region55: #{tpu_custom_call.1} parent=47 // pred_region
          %311 = dma.done [#allocation6], 4096
        $region56: #{tpu_custom_call.1} parent=47 // pred_fallthru
          _
        // Predicated region
        $region57: #{tpu_custom_call.1} parent=47 // pred_check
          %p312 = pneg %p89
        $region58: #{tpu_custom_call.1} parent=47 // pred_check_branch
          %314 = sbr.rel (%p312) target = $region60
        $region59: #{tpu_custom_call.1} parent=47 // pred_region
          %315 = dma.done [#allocation6], 64
        $region60: #{tpu_custom_call.1} parent=47 // pred_fallthru
          _
        // Predicated region
        $region61: #{tpu_custom_call.1} parent=47 // pred_check
          %p316 = pneg %p110
        $region62: #{tpu_custom_call.1} parent=47 // pred_check_branch
          %318 = sbr.rel (%p316) target = $region64
        $region63: #{tpu_custom_call.1} parent=47 // pred_region
          %319 = dma.done [#allocation9], 16384
        $region64: #{tpu_custom_call.1} parent=47 // pred_fallthru
          _
        // Predicated region
        $region65: #{tpu_custom_call.1} parent=47 // pred_check
          %p320 = pneg %p152
        $region66: #{tpu_custom_call.1} parent=47 // pred_check_branch
          %322 = sbr.rel (%p320) target = $region68
        $region67: #{tpu_custom_call.1} parent=47 // pred_region
          %323 = dma.done [#allocation9], 4096
        $region68: #{tpu_custom_call.1} parent=47 // pred_fallthru
          _
        %s324 = sand.u32 %s34, 1
        %s325 = scalar_lea.sflag [#allocation3], %s324
        %s326 = sand.u32 %s34, 1
        %s327 = smul.addr %s326, 4
        %s328 = scalar_lea.vmem [#allocation2], %s327
        %p329 = pneg %p47
        %p330 = pneg %p44
        %p331 = pneg %p68
        %p332 = pneg %p65
        %p333 = pneg %p89
        %p334 = pneg %p86
        %p335 = pneg %p110
        %p336 = pneg %p107
        %p337 = pneg %p131
        %p338 = pneg %p128
        %p339 = pneg %p152
        %p340 = pneg %p149
        %p341 = pneg %p173
        %p342 = pneg %p170
        %p343 = pneg %p199
        %p344 = pneg %p196
        %s345 = sand.u32 %s186, 1
        %s346 = scalar_lea.sflag [#allocation4], %s345
        %s347 = sand.u32 %s186, 1
        %s348 = smul.addr %s347, 8
        %s349 = scalar_lea.vmem [#allocation11], %s348
        %v351 = vld [vmem:[%s303] sm:$0xf]
        %v352 = vld [vmem:[#allocation5] sm:$0xff]
        %v353 = vld [vmem:[#allocation5 + $0x8] sm:$0xff]
        %v354 = vld [vmem:[#allocation5 + $0x10] sm:$0xff]
        %v355 = vld [vmem:[#allocation5 + $0x18] sm:$0xff]
        %v356 = vld [vmem:[#allocation5 + $0x20] sm:$0xff]
        %v357 = vld [vmem:[#allocation5 + $0x28] sm:$0xff]
        %v358 = vld [vmem:[#allocation5 + $0x30] sm:$0xff]
        %v359 = vld [vmem:[#allocation5 + $0x38] sm:$0xff]
        %v360 = vld [vmem:[#allocation5 + $0x40] sm:$0xff]
        %v361 = vld [vmem:[#allocation5 + $0x48] sm:$0xff]
        %v362 = vld [vmem:[#allocation5 + $0x50] sm:$0xff]
        %v363 = vld [vmem:[#allocation5 + $0x58] sm:$0xff]
        %v364 = vld [vmem:[#allocation5 + $0x60] sm:$0xff]
        %v365 = vld [vmem:[#allocation5 + $0x68] sm:$0xff]
        %v366 = vld [vmem:[#allocation5 + $0x70] sm:$0xff]
        %v367 = vld [vmem:[#allocation5 + $0x78] sm:$0xff]
        %v368 = vld [vmem:[#allocation5 + $0x80] sm:$0xff]
        %v369 = vld [vmem:[#allocation5 + $0x88] sm:$0xff]
        %v370 = vld [vmem:[#allocation5 + $0x90] sm:$0xff]
        %v371 = vld [vmem:[#allocation5 + $0x98] sm:$0xff]
        %v372 = vld [vmem:[#allocation5 + $0xa0] sm:$0xff]
        %v373 = vld [vmem:[#allocation5 + $0xa8] sm:$0xff]
        %v374 = vld [vmem:[#allocation5 + $0xb0] sm:$0xff]
        %v375 = vld [vmem:[#allocation5 + $0xb8] sm:$0xff]
        %v376 = vld [vmem:[#allocation5 + $0xc0] sm:$0xff]
        %v377 = vld [vmem:[#allocation5 + $0xc8] sm:$0xff]
        %v378 = vld [vmem:[#allocation5 + $0xd0] sm:$0xff]
        %v379 = vld [vmem:[#allocation5 + $0xd8] sm:$0xff]
        %v380 = vld [vmem:[#allocation5 + $0xe0] sm:$0xff]
        %v381 = vld [vmem:[#allocation5 + $0xe8] sm:$0xff]
        %v382 = vld [vmem:[#allocation5 + $0xf0] sm:$0xff]
        %v383 = vld [vmem:[#allocation5 + $0xf8] sm:$0xff]
        %v384 = vld [vmem:[#allocation7] sm:$0xf]
        %v386 = vlaneseq
        %v387 = vshrl.u32 %v386, 7
        %v388 = vsub.s32 0, %v387
        %v389 = vrot.slane %v384, %v388
        %v390 = vlaneseq
        %v391 = vshrl.u32 %v390, 7
        %v392 = vsub.s32 1, %v391
        %v393 = vrot.slane %v384, %v392
        %v394 = vlaneseq
        %v395 = vshrl.u32 %v394, 7
        %v396 = vsub.s32 2, %v395
        %v397 = vrot.slane %v384, %v396
        %v398 = vlaneseq
        %v399 = vshrl.u32 %v398, 7
        %v400 = vsub.s32 3, %v399
        %v401 = vrot.slane %v384, %v400
        %v438 = vunpack.c.l.b16 %v352
        %v439 = vunpack.c.h.b16 %v352
        %v440 = vunpack.c.l.b16 %v353
        %v441 = vunpack.c.h.b16 %v353
        %v442 = vunpack.c.l.b16 %v354
        %v443 = vunpack.c.h.b16 %v354
        %v444 = vunpack.c.l.b16 %v355
        %v445 = vunpack.c.h.b16 %v355
        %v446 = vunpack.c.l.b16 %v356
        %v447 = vunpack.c.h.b16 %v356
        %v448 = vunpack.c.l.b16 %v357
        %v449 = vunpack.c.h.b16 %v357
        %v450 = vunpack.c.l.b16 %v358
        %v451 = vunpack.c.h.b16 %v358
        %v452 = vunpack.c.l.b16 %v359
        %v453 = vunpack.c.h.b16 %v359
        %v454 = vunpack.c.l.b16 %v360
        %v455 = vunpack.c.h.b16 %v360
        %v456 = vunpack.c.l.b16 %v361
        %v457 = vunpack.c.h.b16 %v361
        %v458 = vunpack.c.l.b16 %v362
        %v459 = vunpack.c.h.b16 %v362
        %v460 = vunpack.c.l.b16 %v363
        %v461 = vunpack.c.h.b16 %v363
        %v462 = vunpack.c.l.b16 %v364
        %v463 = vunpack.c.h.b16 %v364
        %v464 = vunpack.c.l.b16 %v365
        %v465 = vunpack.c.h.b16 %v365
        %v466 = vunpack.c.l.b16 %v366
        %v467 = vunpack.c.h.b16 %v366
        %v468 = vunpack.c.l.b16 %v367
        %v469 = vunpack.c.h.b16 %v367
        %v470 = vunpack.c.l.b16 %v368
        %v471 = vunpack.c.h.b16 %v368
        %v472 = vunpack.c.l.b16 %v369
        %v473 = vunpack.c.h.b16 %v369
        %v474 = vunpack.c.l.b16 %v370
        %v475 = vunpack.c.h.b16 %v370
        %v476 = vunpack.c.l.b16 %v371
        %v477 = vunpack.c.h.b16 %v371
        %v478 = vunpack.c.l.b16 %v372
        %v479 = vunpack.c.h.b16 %v372
        %v480 = vunpack.c.l.b16 %v373
        %v481 = vunpack.c.h.b16 %v373
        %v482 = vunpack.c.l.b16 %v374
        %v483 = vunpack.c.h.b16 %v374
        %v484 = vunpack.c.l.b16 %v375
        %v485 = vunpack.c.h.b16 %v375
        %v486 = vunpack.c.l.b16 %v376
        %v487 = vunpack.c.h.b16 %v376
        %v488 = vunpack.c.l.b16 %v377
        %v489 = vunpack.c.h.b16 %v377
        %v490 = vunpack.c.l.b16 %v378
        %v491 = vunpack.c.h.b16 %v378
        %v492 = vunpack.c.l.b16 %v379
        %v493 = vunpack.c.h.b16 %v379
        %v494 = vunpack.c.l.b16 %v380
        %v495 = vunpack.c.h.b16 %v380
        %v496 = vunpack.c.l.b16 %v381
        %v497 = vunpack.c.h.b16 %v381
        %v498 = vunpack.c.l.b16 %v382
        %v499 = vunpack.c.h.b16 %v382
        %v500 = vunpack.c.l.b16 %v383
        %v501 = vunpack.c.h.b16 %v383
        %v502 = vpack.c.b16 %v442, %v438
        %v503 = vpack.c.b16 %v443, %v439
        %v504 = vpack.c.b16 %v444, %v440
        %v505 = vpack.c.b16 %v445, %v441
        %v506 = vpack.c.b16 %v450, %v446
        %v507 = vpack.c.b16 %v451, %v447
        %v508 = vpack.c.b16 %v452, %v448
        %v509 = vpack.c.b16 %v453, %v449
        %v510 = vpack.c.b16 %v458, %v454
        %v511 = vpack.c.b16 %v459, %v455
        %v512 = vpack.c.b16 %v460, %v456
        %v513 = vpack.c.b16 %v461, %v457
        %v514 = vpack.c.b16 %v466, %v462
        %v515 = vpack.c.b16 %v467, %v463
        %v516 = vpack.c.b16 %v468, %v464
        %v517 = vpack.c.b16 %v469, %v465
        %v518 = vpack.c.b16 %v474, %v470
        %v519 = vpack.c.b16 %v475, %v471
        %v520 = vpack.c.b16 %v476, %v472
        %v521 = vpack.c.b16 %v477, %v473
        %v522 = vpack.c.b16 %v482, %v478
        %v523 = vpack.c.b16 %v483, %v479
        %v524 = vpack.c.b16 %v484, %v480
        %v525 = vpack.c.b16 %v485, %v481
        %v526 = vpack.c.b16 %v490, %v486
        %v527 = vpack.c.b16 %v491, %v487
        %v528 = vpack.c.b16 %v492, %v488
        %v529 = vpack.c.b16 %v493, %v489
        %v530 = vpack.c.b16 %v498, %v494
        %v531 = vpack.c.b16 %v499, %v495
        %v532 = vpack.c.b16 %v500, %v496
        %v533 = vpack.c.b16 %v501, %v497
        %566 = vmatprep.subr.bf16.mxu0 %v531
        %567 = vmatpush1.bf16.msra.mxu0 %v530
        %568 = vmatprep.subr.bf16.mxu0 %v527
        %569 = vmatpush1.bf16.msra.mxu0 %v526
        %570 = vmatprep.subr.bf16.mxu0 %v523
        %571 = vmatpush1.bf16.msra.mxu0 %v522
        %572 = vmatprep.subr.bf16.mxu0 %v519
        %573 = vmatpush1.bf16.msra.mxu0 %v518
        %574 = vmatprep.subr.bf16.mxu0 %v515
        %575 = vmatpush1.bf16.msra.mxu0 %v514
        %576 = vmatprep.subr.bf16.mxu0 %v511
        %577 = vmatpush1.bf16.msra.mxu0 %v510
        %578 = vmatprep.subr.bf16.mxu0 %v507
        %579 = vmatpush1.bf16.msra.mxu0 %v506
        %580 = vmatprep.subr.bf16.mxu0 %v503
        %581 = vmatpush1.bf16.msra.mxu0 %v502
        %582 = vmatprep.subr.bf16.mxu0 0
        %583 = vmatpush2.bf16.msra.mxu0 0
        %584 = vmatprep.subr.bf16.mxu0 0
        %585 = vmatpush2.bf16.msra.mxu0 0
        %586 = vmatprep.subr.bf16.mxu0 0
        %587 = vmatpush2.bf16.msra.mxu0 0
        %588 = vmatprep.subr.bf16.mxu0 0
        %589 = vmatpush2.bf16.msra.mxu0 0
        %590 = vmatprep.subr.bf16.mxu0 0
        %591 = vmatpush2.bf16.msra.mxu0 0
        %592 = vmatprep.subr.bf16.mxu0 0
        %593 = vmatpush2.bf16.msra.mxu0 0
        %594 = vmatprep.subr.bf16.mxu0 0
        %595 = vmatpush2.bf16.msra.mxu0 0
        %596 = vmatprep.subr.bf16.mxu0 0
        %597 = vmatpush2.bf16.msra.mxu0 0
        %598 = vmatprep.mubr.bf16.mxu0 0
        %599 = vmatmul.mubr.bf16.gmra.mxu0 %v351
        %v600 = vpop.f32.mrf.mxu0
        %v601 = vadd.f32 %v389, %v600
        %v602 = vpop.f32.mrf.mxu0
        %v603 = vadd.f32 %v393, %v602
        %v604 = vpop.f32.mrf.mxu0
        %v605 = vpop.f32.mrf.mxu0
        %606 = vdwg.mxu0
        %607 = vmatprep.subr.bf16.mxu0 %v533
        %608 = vmatpush1.bf16.msra.mxu0 %v532
        %609 = vmatprep.subr.bf16.mxu0 %v529
        %610 = vmatpush1.bf16.msra.mxu0 %v528
        %611 = vmatprep.subr.bf16.mxu0 %v525
        %612 = vmatpush1.bf16.msra.mxu0 %v524
        %613 = vmatprep.subr.bf16.mxu0 %v521
        %614 = vmatpush1.bf16.msra.mxu0 %v520
        %615 = vmatprep.subr.bf16.mxu0 %v517
        %616 = vmatpush1.bf16.msra.mxu0 %v516
        %617 = vmatprep.subr.bf16.mxu0 %v513
        %618 = vmatpush1.bf16.msra.mxu0 %v512
        %619 = vmatprep.subr.bf16.mxu0 %v509
        %620 = vmatpush1.bf16.msra.mxu0 %v508
        %621 = vmatprep.subr.bf16.mxu0 %v505
        %622 = vmatpush1.bf16.msra.mxu0 %v504
        %623 = vmatprep.subr.bf16.mxu0 0
        %624 = vmatpush2.bf16.msra.mxu0 0
        %625 = vmatprep.subr.bf16.mxu0 0
        %626 = vmatpush2.bf16.msra.mxu0 0
        %627 = vmatprep.subr.bf16.mxu0 0
        %628 = vmatpush2.bf16.msra.mxu0 0
        %629 = vmatprep.subr.bf16.mxu0 0
        %630 = vmatpush2.bf16.msra.mxu0 0
        %631 = vmatprep.subr.bf16.mxu0 0
        %632 = vmatpush2.bf16.msra.mxu0 0
        %633 = vmatprep.subr.bf16.mxu0 0
        %634 = vmatpush2.bf16.msra.mxu0 0
        %635 = vmatprep.subr.bf16.mxu0 0
        %636 = vmatpush2.bf16.msra.mxu0 0
        %637 = vmatprep.subr.bf16.mxu0 0
        %638 = vmatpush2.bf16.msra.mxu0 0
        %639 = vmatprep.mubr.bf16.mxu0 0
        %640 = vmatmul.mubr.bf16.gmra.mxu0 %v351
        %v641 = vpop.f32.mrf.mxu0
        %v642 = vadd.f32 %v397, %v641
        %v643 = vpop.f32.mrf.mxu0
        %v644 = vadd.f32 %v401, %v643
        %v645 = vpop.f32.mrf.mxu0
        %v646 = vpop.f32.mrf.mxu0
        %647 = vdwg.mxu0
        %vm648 = vcmp.gt.f32.partialorder %v601, 0.0
        %vm649 = vcmp.gt.f32.partialorder %v603, 0.0
        %vm650 = vcmp.gt.f32.partialorder %v642, 0.0
        %vm651 = vcmp.gt.f32.partialorder %v644, 0.0
        %v652 = vmul.f32 %v601, 0.2
        %v653 = vmul.f32 %v603, 0.2
        %v654 = vmul.f32 %v642, 0.2
        %v655 = vmul.f32 %v644, 0.2
        %v656 = vsel %vm648, %v601, %v652
        %v657 = vsel %vm649, %v603, %v653
        %v658 = vsel %vm650, %v642, %v654
        %v659 = vsel %vm651, %v644, %v655
        %v660 = vpack.c.bf16 %v656, %v656
        %v661 = vpack.c.bf16 %v657, %v657
        %v662 = vpack.c.bf16 %v658, %v658
        %v663 = vpack.c.bf16 %v659, %v659
        %v664 = vld [vmem:[#allocation8] sm:$0xff]
        %v665 = vld [vmem:[#allocation8 + $0x8] sm:$0xff]
        %v666 = vld [vmem:[#allocation8 + $0x10] sm:$0xff]
        %v667 = vld [vmem:[#allocation8 + $0x18] sm:$0xff]
        %v668 = vld [vmem:[#allocation8 + $0x20] sm:$0xff]
        %v669 = vld [vmem:[#allocation8 + $0x28] sm:$0xff]
        %v670 = vld [vmem:[#allocation8 + $0x30] sm:$0xff]
        %v671 = vld [vmem:[#allocation8 + $0x38] sm:$0xff]
        %v672 = vld [vmem:[#allocation8 + $0x40] sm:$0xff]
        %v673 = vld [vmem:[#allocation8 + $0x48] sm:$0xff]
        %v674 = vld [vmem:[#allocation8 + $0x50] sm:$0xff]
        %v675 = vld [vmem:[#allocation8 + $0x58] sm:$0xff]
        %v676 = vld [vmem:[#allocation8 + $0x60] sm:$0xff]
        %v677 = vld [vmem:[#allocation8 + $0x68] sm:$0xff]
        %v678 = vld [vmem:[#allocation8 + $0x70] sm:$0xff]
        %v679 = vld [vmem:[#allocation8 + $0x78] sm:$0xff]
        %v680 = vld [vmem:[#allocation8 + $0x80] sm:$0xff]
        %v681 = vld [vmem:[#allocation8 + $0x88] sm:$0xff]
        %v682 = vld [vmem:[#allocation8 + $0x90] sm:$0xff]
        %v683 = vld [vmem:[#allocation8 + $0x98] sm:$0xff]
        %v684 = vld [vmem:[#allocation8 + $0xa0] sm:$0xff]
        %v685 = vld [vmem:[#allocation8 + $0xa8] sm:$0xff]
        %v686 = vld [vmem:[#allocation8 + $0xb0] sm:$0xff]
        %v687 = vld [vmem:[#allocation8 + $0xb8] sm:$0xff]
        %v688 = vld [vmem:[#allocation8 + $0xc0] sm:$0xff]
        %v689 = vld [vmem:[#allocation8 + $0xc8] sm:$0xff]
        %v690 = vld [vmem:[#allocation8 + $0xd0] sm:$0xff]
        %v691 = vld [vmem:[#allocation8 + $0xd8] sm:$0xff]
        %v692 = vld [vmem:[#allocation8 + $0xe0] sm:$0xff]
        %v693 = vld [vmem:[#allocation8 + $0xe8] sm:$0xff]
        %v694 = vld [vmem:[#allocation8 + $0xf0] sm:$0xff]
        %v695 = vld [vmem:[#allocation8 + $0xf8] sm:$0xff]
        %v696 = vld [vmem:[#allocation8 + $0x100] sm:$0xff]
        %v697 = vld [vmem:[#allocation8 + $0x108] sm:$0xff]
        %v698 = vld [vmem:[#allocation8 + $0x110] sm:$0xff]
        %v699 = vld [vmem:[#allocation8 + $0x118] sm:$0xff]
        %v700 = vld [vmem:[#allocation8 + $0x120] sm:$0xff]
        %v701 = vld [vmem:[#allocation8 + $0x128] sm:$0xff]
        %v702 = vld [vmem:[#allocation8 + $0x130] sm:$0xff]
        %v703 = vld [vmem:[#allocation8 + $0x138] sm:$0xff]
        %v704 = vld [vmem:[#allocation8 + $0x140] sm:$0xff]
        %v705 = vld [vmem:[#allocation8 + $0x148] sm:$0xff]
        %v706 = vld [vmem:[#allocation8 + $0x150] sm:$0xff]
        %v707 = vld [vmem:[#allocation8 + $0x158] sm:$0xff]
        %v708 = vld [vmem:[#allocation8 + $0x160] sm:$0xff]
        %v709 = vld [vmem:[#allocation8 + $0x168] sm:$0xff]
        %v710 = vld [vmem:[#allocation8 + $0x170] sm:$0xff]
        %v711 = vld [vmem:[#allocation8 + $0x178] sm:$0xff]
        %v712 = vld [vmem:[#allocation8 + $0x180] sm:$0xff]
        %v713 = vld [vmem:[#allocation8 + $0x188] sm:$0xff]
        %v714 = vld [vmem:[#allocation8 + $0x190] sm:$0xff]
        %v715 = vld [vmem:[#allocation8 + $0x198] sm:$0xff]
        %v716 = vld [vmem:[#allocation8 + $0x1a0] sm:$0xff]
        %v717 = vld [vmem:[#allocation8 + $0x1a8] sm:$0xff]
        %v718 = vld [vmem:[#allocation8 + $0x1b0] sm:$0xff]
        %v719 = vld [vmem:[#allocation8 + $0x1b8] sm:$0xff]
        %v720 = vld [vmem:[#allocation8 + $0x1c0] sm:$0xff]
        %v721 = vld [vmem:[#allocation8 + $0x1c8] sm:$0xff]
        %v722 = vld [vmem:[#allocation8 + $0x1d0] sm:$0xff]
        %v723 = vld [vmem:[#allocation8 + $0x1d8] sm:$0xff]
        %v724 = vld [vmem:[#allocation8 + $0x1e0] sm:$0xff]
        %v725 = vld [vmem:[#allocation8 + $0x1e8] sm:$0xff]
        %v726 = vld [vmem:[#allocation8 + $0x1f0] sm:$0xff]
        %v727 = vld [vmem:[#allocation8 + $0x1f8] sm:$0xff]
        %v728 = vld [vmem:[#allocation8 + $0x200] sm:$0xff]
        %v729 = vld [vmem:[#allocation8 + $0x208] sm:$0xff]
        %v730 = vld [vmem:[#allocation8 + $0x210] sm:$0xff]
        %v731 = vld [vmem:[#allocation8 + $0x218] sm:$0xff]
        %v732 = vld [vmem:[#allocation8 + $0x220] sm:$0xff]
        %v733 = vld [vmem:[#allocation8 + $0x228] sm:$0xff]
        %v734 = vld [vmem:[#allocation8 + $0x230] sm:$0xff]
        %v735 = vld [vmem:[#allocation8 + $0x238] sm:$0xff]
        %v736 = vld [vmem:[#allocation8 + $0x240] sm:$0xff]
        %v737 = vld [vmem:[#allocation8 + $0x248] sm:$0xff]
        %v738 = vld [vmem:[#allocation8 + $0x250] sm:$0xff]
        %v739 = vld [vmem:[#allocation8 + $0x258] sm:$0xff]
        %v740 = vld [vmem:[#allocation8 + $0x260] sm:$0xff]
        %v741 = vld [vmem:[#allocation8 + $0x268] sm:$0xff]
        %v742 = vld [vmem:[#allocation8 + $0x270] sm:$0xff]
        %v743 = vld [vmem:[#allocation8 + $0x278] sm:$0xff]
        %v744 = vld [vmem:[#allocation8 + $0x280] sm:$0xff]
        %v745 = vld [vmem:[#allocation8 + $0x288] sm:$0xff]
        %v746 = vld [vmem:[#allocation8 + $0x290] sm:$0xff]
        %v747 = vld [vmem:[#allocation8 + $0x298] sm:$0xff]
        %v748 = vld [vmem:[#allocation8 + $0x2a0] sm:$0xff]
        %v749 = vld [vmem:[#allocation8 + $0x2a8] sm:$0xff]
        %v750 = vld [vmem:[#allocation8 + $0x2b0] sm:$0xff]
        %v751 = vld [vmem:[#allocation8 + $0x2b8] sm:$0xff]
        %v752 = vld [vmem:[#allocation8 + $0x2c0] sm:$0xff]
        %v753 = vld [vmem:[#allocation8 + $0x2c8] sm:$0xff]
        %v754 = vld [vmem:[#allocation8 + $0x2d0] sm:$0xff]
        %v755 = vld [vmem:[#allocation8 + $0x2d8] sm:$0xff]
        %v756 = vld [vmem:[#allocation8 + $0x2e0] sm:$0xff]
        %v757 = vld [vmem:[#allocation8 + $0x2e8] sm:$0xff]
        %v758 = vld [vmem:[#allocation8 + $0x2f0] sm:$0xff]
        %v759 = vld [vmem:[#allocation8 + $0x2f8] sm:$0xff]
        %v760 = vld [vmem:[#allocation8 + $0x300] sm:$0xff]
        %v761 = vld [vmem:[#allocation8 + $0x308] sm:$0xff]
        %v762 = vld [vmem:[#allocation8 + $0x310] sm:$0xff]
        %v763 = vld [vmem:[#allocation8 + $0x318] sm:$0xff]
        %v764 = vld [vmem:[#allocation8 + $0x320] sm:$0xff]
        %v765 = vld [vmem:[#allocation8 + $0x328] sm:$0xff]
        %v766 = vld [vmem:[#allocation8 + $0x330] sm:$0xff]
        %v767 = vld [vmem:[#allocation8 + $0x338] sm:$0xff]
        %v768 = vld [vmem:[#allocation8 + $0x340] sm:$0xff]
        %v769 = vld [vmem:[#allocation8 + $0x348] sm:$0xff]
        %v770 = vld [vmem:[#allocation8 + $0x350] sm:$0xff]
        %v771 = vld [vmem:[#allocation8 + $0x358] sm:$0xff]
        %v772 = vld [vmem:[#allocation8 + $0x360] sm:$0xff]
        %v773 = vld [vmem:[#allocation8 + $0x368] sm:$0xff]
        %v774 = vld [vmem:[#allocation8 + $0x370] sm:$0xff]
        %v775 = vld [vmem:[#allocation8 + $0x378] sm:$0xff]
        %v776 = vld [vmem:[#allocation8 + $0x380] sm:$0xff]
        %v777 = vld [vmem:[#allocation8 + $0x388] sm:$0xff]
        %v778 = vld [vmem:[#allocation8 + $0x390] sm:$0xff]
        %v779 = vld [vmem:[#allocation8 + $0x398] sm:$0xff]
        %v780 = vld [vmem:[#allocation8 + $0x3a0] sm:$0xff]
        %v781 = vld [vmem:[#allocation8 + $0x3a8] sm:$0xff]
        %v782 = vld [vmem:[#allocation8 + $0x3b0] sm:$0xff]
        %v783 = vld [vmem:[#allocation8 + $0x3b8] sm:$0xff]
        %v784 = vld [vmem:[#allocation8 + $0x3c0] sm:$0xff]
        %v785 = vld [vmem:[#allocation8 + $0x3c8] sm:$0xff]
        %v786 = vld [vmem:[#allocation8 + $0x3d0] sm:$0xff]
        %v787 = vld [vmem:[#allocation8 + $0x3d8] sm:$0xff]
        %v788 = vld [vmem:[#allocation8 + $0x3e0] sm:$0xff]
        %v789 = vld [vmem:[#allocation8 + $0x3e8] sm:$0xff]
        %v790 = vld [vmem:[#allocation8 + $0x3f0] sm:$0xff]
        %v791 = vld [vmem:[#allocation8 + $0x3f8] sm:$0xff]
        %v792 = vld [vmem:[%s4] sm:$0xf]
        %v794 = vlaneseq
        %v795 = vshrl.u32 %v794, 7
        %v796 = vsub.s32 0, %v795
        %v797 = vrot.slane %v792, %v796
        %v798 = vlaneseq
        %v799 = vshrl.u32 %v798, 7
        %v800 = vsub.s32 1, %v799
        %v801 = vrot.slane %v792, %v800
        %v802 = vlaneseq
        %v803 = vshrl.u32 %v802, 7
        %v804 = vsub.s32 2, %v803
        %v805 = vrot.slane %v792, %v804
        %v806 = vlaneseq
        %v807 = vshrl.u32 %v806, 7
        %v808 = vsub.s32 3, %v807
        %v809 = vrot.slane %v792, %v808
        %v942 = vunpack.c.l.b16 %v664
        %v943 = vunpack.c.h.b16 %v664
        %v944 = vunpack.c.l.b16 %v665
        %v945 = vunpack.c.h.b16 %v665
        %v946 = vunpack.c.l.b16 %v666
        %v947 = vunpack.c.h.b16 %v666
        %v948 = vunpack.c.l.b16 %v667
        %v949 = vunpack.c.h.b16 %v667
        %v950 = vunpack.c.l.b16 %v668
        %v951 = vunpack.c.h.b16 %v668
        %v952 = vunpack.c.l.b16 %v669
        %v953 = vunpack.c.h.b16 %v669
        %v954 = vunpack.c.l.b16 %v670
        %v955 = vunpack.c.h.b16 %v670
        %v956 = vunpack.c.l.b16 %v671
        %v957 = vunpack.c.h.b16 %v671
        %v958 = vunpack.c.l.b16 %v672
        %v959 = vunpack.c.h.b16 %v672
        %v960 = vunpack.c.l.b16 %v673
        %v961 = vunpack.c.h.b16 %v673
        %v962 = vunpack.c.l.b16 %v674
        %v963 = vunpack.c.h.b16 %v674
        %v964 = vunpack.c.l.b16 %v675
        %v965 = vunpack.c.h.b16 %v675
        %v966 = vunpack.c.l.b16 %v676
        %v967 = vunpack.c.h.b16 %v676
        %v968 = vunpack.c.l.b16 %v677
        %v969 = vunpack.c.h.b16 %v677
        %v970 = vunpack.c.l.b16 %v678
        %v971 = vunpack.c.h.b16 %v678
        %v972 = vunpack.c.l.b16 %v679
        %v973 = vunpack.c.h.b16 %v679
        %v974 = vunpack.c.l.b16 %v680
        %v975 = vunpack.c.h.b16 %v680
        %v976 = vunpack.c.l.b16 %v681
        %v977 = vunpack.c.h.b16 %v681
        %v978 = vunpack.c.l.b16 %v682
        %v979 = vunpack.c.h.b16 %v682
        %v980 = vunpack.c.l.b16 %v683
        %v981 = vunpack.c.h.b16 %v683
        %v982 = vunpack.c.l.b16 %v684
        %v983 = vunpack.c.h.b16 %v684
        %v984 = vunpack.c.l.b16 %v685
        %v985 = vunpack.c.h.b16 %v685
        %v986 = vunpack.c.l.b16 %v686
        %v987 = vunpack.c.h.b16 %v686
        %v988 = vunpack.c.l.b16 %v687
        %v989 = vunpack.c.h.b16 %v687
        %v990 = vunpack.c.l.b16 %v688
        %v991 = vunpack.c.h.b16 %v688
        %v992 = vunpack.c.l.b16 %v689
        %v993 = vunpack.c.h.b16 %v689
        %v994 = vunpack.c.l.b16 %v690
        %v995 = vunpack.c.h.b16 %v690
        %v996 = vunpack.c.l.b16 %v691
        %v997 = vunpack.c.h.b16 %v691
        %v998 = vunpack.c.l.b16 %v692
        %v999 = vunpack.c.h.b16 %v692
        %v1000 = vunpack.c.l.b16 %v693
        %v1001 = vunpack.c.h.b16 %v693
        %v1002 = vunpack.c.l.b16 %v694
        %v1003 = vunpack.c.h.b16 %v694
        %v1004 = vunpack.c.l.b16 %v695
        %v1005 = vunpack.c.h.b16 %v695
        %v1006 = vunpack.c.l.b16 %v696
        %v1007 = vunpack.c.h.b16 %v696
        %v1008 = vunpack.c.l.b16 %v697
        %v1009 = vunpack.c.h.b16 %v697
        %v1010 = vunpack.c.l.b16 %v698
        %v1011 = vunpack.c.h.b16 %v698
        %v1012 = vunpack.c.l.b16 %v699
        %v1013 = vunpack.c.h.b16 %v699
        %v1014 = vunpack.c.l.b16 %v700
        %v1015 = vunpack.c.h.b16 %v700
        %v1016 = vunpack.c.l.b16 %v701
        %v1017 = vunpack.c.h.b16 %v701
        %v1018 = vunpack.c.l.b16 %v702
        %v1019 = vunpack.c.h.b16 %v702
        %v1020 = vunpack.c.l.b16 %v703
        %v1021 = vunpack.c.h.b16 %v703
        %v1022 = vunpack.c.l.b16 %v704
        %v1023 = vunpack.c.h.b16 %v704
        %v1024 = vunpack.c.l.b16 %v705
        %v1025 = vunpack.c.h.b16 %v705
        %v1026 = vunpack.c.l.b16 %v706
        %v1027 = vunpack.c.h.b16 %v706
        %v1028 = vunpack.c.l.b16 %v707
        %v1029 = vunpack.c.h.b16 %v707
        %v1030 = vunpack.c.l.b16 %v708
        %v1031 = vunpack.c.h.b16 %v708
        %v1032 = vunpack.c.l.b16 %v709
        %v1033 = vunpack.c.h.b16 %v709
        %v1034 = vunpack.c.l.b16 %v710
        %v1035 = vunpack.c.h.b16 %v710
        %v1036 = vunpack.c.l.b16 %v711
        %v1037 = vunpack.c.h.b16 %v711
        %v1038 = vunpack.c.l.b16 %v712
        %v1039 = vunpack.c.h.b16 %v712
        %v1040 = vunpack.c.l.b16 %v713
        %v1041 = vunpack.c.h.b16 %v713
        %v1042 = vunpack.c.l.b16 %v714
        %v1043 = vunpack.c.h.b16 %v714
        %v1044 = vunpack.c.l.b16 %v715
        %v1045 = vunpack.c.h.b16 %v715
        %v1046 = vunpack.c.l.b16 %v716
        %v1047 = vunpack.c.h.b16 %v716
        %v1048 = vunpack.c.l.b16 %v717
        %v1049 = vunpack.c.h.b16 %v717
        %v1050 = vunpack.c.l.b16 %v718
        %v1051 = vunpack.c.h.b16 %v718
        %v1052 = vunpack.c.l.b16 %v719
        %v1053 = vunpack.c.h.b16 %v719
        %v1054 = vunpack.c.l.b16 %v720
        %v1055 = vunpack.c.h.b16 %v720
        %v1056 = vunpack.c.l.b16 %v721
        %v1057 = vunpack.c.h.b16 %v721
        %v1058 = vunpack.c.l.b16 %v722
        %v1059 = vunpack.c.h.b16 %v722
        %v1060 = vunpack.c.l.b16 %v723
        %v1061 = vunpack.c.h.b16 %v723
        %v1062 = vunpack.c.l.b16 %v724
        %v1063 = vunpack.c.h.b16 %v724
        %v1064 = vunpack.c.l.b16 %v725
        %v1065 = vunpack.c.h.b16 %v725
        %v1066 = vunpack.c.l.b16 %v726
        %v1067 = vunpack.c.h.b16 %v726
        %v1068 = vunpack.c.l.b16 %v727
        %v1069 = vunpack.c.h.b16 %v727
        %v1070 = vunpack.c.l.b16 %v728
        %v1071 = vunpack.c.h.b16 %v728
        %v1072 = vunpack.c.l.b16 %v729
        %v1073 = vunpack.c.h.b16 %v729
        %v1074 = vunpack.c.l.b16 %v730
        %v1075 = vunpack.c.h.b16 %v730
        %v1076 = vunpack.c.l.b16 %v731
        %v1077 = vunpack.c.h.b16 %v731
        %v1078 = vunpack.c.l.b16 %v732
        %v1079 = vunpack.c.h.b16 %v732
        %v1080 = vunpack.c.l.b16 %v733
        %v1081 = vunpack.c.h.b16 %v733
        %v1082 = vunpack.c.l.b16 %v734
        %v1083 = vunpack.c.h.b16 %v734
        %v1084 = vunpack.c.l.b16 %v735
        %v1085 = vunpack.c.h.b16 %v735
        %v1086 = vunpack.c.l.b16 %v736
        %v1087 = vunpack.c.h.b16 %v736
        %v1088 = vunpack.c.l.b16 %v737
        %v1089 = vunpack.c.h.b16 %v737
        %v1090 = vunpack.c.l.b16 %v738
        %v1091 = vunpack.c.h.b16 %v738
        %v1092 = vunpack.c.l.b16 %v739
        %v1093 = vunpack.c.h.b16 %v739
        %v1094 = vunpack.c.l.b16 %v740
        %v1095 = vunpack.c.h.b16 %v740
        %v1096 = vunpack.c.l.b16 %v741
        %v1097 = vunpack.c.h.b16 %v741
        %v1098 = vunpack.c.l.b16 %v742
        %v1099 = vunpack.c.h.b16 %v742
        %v1100 = vunpack.c.l.b16 %v743
        %v1101 = vunpack.c.h.b16 %v743
        %v1102 = vunpack.c.l.b16 %v744
        %v1103 = vunpack.c.h.b16 %v744
        %v1104 = vunpack.c.l.b16 %v745
        %v1105 = vunpack.c.h.b16 %v745
        %v1106 = vunpack.c.l.b16 %v746
        %v1107 = vunpack.c.h.b16 %v746
        %v1108 = vunpack.c.l.b16 %v747
        %v1109 = vunpack.c.h.b16 %v747
        %v1110 = vunpack.c.l.b16 %v748
        %v1111 = vunpack.c.h.b16 %v748
        %v1112 = vunpack.c.l.b16 %v749
        %v1113 = vunpack.c.h.b16 %v749
        %v1114 = vunpack.c.l.b16 %v750
        %v1115 = vunpack.c.h.b16 %v750
        %v1116 = vunpack.c.l.b16 %v751
        %v1117 = vunpack.c.h.b16 %v751
        %v1118 = vunpack.c.l.b16 %v752
        %v1119 = vunpack.c.h.b16 %v752
        %v1120 = vunpack.c.l.b16 %v753
        %v1121 = vunpack.c.h.b16 %v753
        %v1122 = vunpack.c.l.b16 %v754
        %v1123 = vunpack.c.h.b16 %v754
        %v1124 = vunpack.c.l.b16 %v755
        %v1125 = vunpack.c.h.b16 %v755
        %v1126 = vunpack.c.l.b16 %v756
        %v1127 = vunpack.c.h.b16 %v756
        %v1128 = vunpack.c.l.b16 %v757
        %v1129 = vunpack.c.h.b16 %v757
        %v1130 = vunpack.c.l.b16 %v758
        %v1131 = vunpack.c.h.b16 %v758
        %v1132 = vunpack.c.l.b16 %v759
        %v1133 = vunpack.c.h.b16 %v759
        %v1134 = vunpack.c.l.b16 %v760
        %v1135 = vunpack.c.h.b16 %v760
        %v1136 = vunpack.c.l.b16 %v761
        %v1137 = vunpack.c.h.b16 %v761
        %v1138 = vunpack.c.l.b16 %v762
        %v1139 = vunpack.c.h.b16 %v762
        %v1140 = vunpack.c.l.b16 %v763
        %v1141 = vunpack.c.h.b16 %v763
        %v1142 = vunpack.c.l.b16 %v764
        %v1143 = vunpack.c.h.b16 %v764
        %v1144 = vunpack.c.l.b16 %v765
        %v1145 = vunpack.c.h.b16 %v765
        %v1146 = vunpack.c.l.b16 %v766
        %v1147 = vunpack.c.h.b16 %v766
        %v1148 = vunpack.c.l.b16 %v767
        %v1149 = vunpack.c.h.b16 %v767
        %v1150 = vunpack.c.l.b16 %v768
        %v1151 = vunpack.c.h.b16 %v768
        %v1152 = vunpack.c.l.b16 %v769
        %v1153 = vunpack.c.h.b16 %v769
        %v1154 = vunpack.c.l.b16 %v770
        %v1155 = vunpack.c.h.b16 %v770
        %v1156 = vunpack.c.l.b16 %v771
        %v1157 = vunpack.c.h.b16 %v771
        %v1158 = vunpack.c.l.b16 %v772
        %v1159 = vunpack.c.h.b16 %v772
        %v1160 = vunpack.c.l.b16 %v773
        %v1161 = vunpack.c.h.b16 %v773
        %v1162 = vunpack.c.l.b16 %v774
        %v1163 = vunpack.c.h.b16 %v774
        %v1164 = vunpack.c.l.b16 %v775
        %v1165 = vunpack.c.h.b16 %v775
        %v1166 = vunpack.c.l.b16 %v776
        %v1167 = vunpack.c.h.b16 %v776
        %v1168 = vunpack.c.l.b16 %v777
        %v1169 = vunpack.c.h.b16 %v777
        %v1170 = vunpack.c.l.b16 %v778
        %v1171 = vunpack.c.h.b16 %v778
        %v1172 = vunpack.c.l.b16 %v779
        %v1173 = vunpack.c.h.b16 %v779
        %v1174 = vunpack.c.l.b16 %v780
        %v1175 = vunpack.c.h.b16 %v780
        %v1176 = vunpack.c.l.b16 %v781
        %v1177 = vunpack.c.h.b16 %v781
        %v1178 = vunpack.c.l.b16 %v782
        %v1179 = vunpack.c.h.b16 %v782
        %v1180 = vunpack.c.l.b16 %v783
        %v1181 = vunpack.c.h.b16 %v783
        %v1182 = vunpack.c.l.b16 %v784
        %v1183 = vunpack.c.h.b16 %v784
        %v1184 = vunpack.c.l.b16 %v785
        %v1185 = vunpack.c.h.b16 %v785
        %v1186 = vunpack.c.l.b16 %v786
        %v1187 = vunpack.c.h.b16 %v786
        %v1188 = vunpack.c.l.b16 %v787
        %v1189 = vunpack.c.h.b16 %v787
        %v1190 = vunpack.c.l.b16 %v788
        %v1191 = vunpack.c.h.b16 %v788
        %v1192 = vunpack.c.l.b16 %v789
        %v1193 = vunpack.c.h.b16 %v789
        %v1194 = vunpack.c.l.b16 %v790
        %v1195 = vunpack.c.h.b16 %v790
        %v1196 = vunpack.c.l.b16 %v791
        %v1197 = vunpack.c.h.b16 %v791
        %v1198 = vpack.c.b16 %v946, %v942
        %v1199 = vpack.c.b16 %v947, %v943
        %v1200 = vpack.c.b16 %v948, %v944
        %v1201 = vpack.c.b16 %v949, %v945
        %v1202 = vpack.c.b16 %v954, %v950
        %v1203 = vpack.c.b16 %v955, %v951
        %v1204 = vpack.c.b16 %v956, %v952
        %v1205 = vpack.c.b16 %v957, %v953
        %v1206 = vpack.c.b16 %v962, %v958
        %v1207 = vpack.c.b16 %v963, %v959
        %v1208 = vpack.c.b16 %v964, %v960
        %v1209 = vpack.c.b16 %v965, %v961
        %v1210 = vpack.c.b16 %v970, %v966
        %v1211 = vpack.c.b16 %v971, %v967
        %v1212 = vpack.c.b16 %v972, %v968
        %v1213 = vpack.c.b16 %v973, %v969
        %v1214 = vpack.c.b16 %v978, %v974
        %v1215 = vpack.c.b16 %v979, %v975
        %v1216 = vpack.c.b16 %v980, %v976
        %v1217 = vpack.c.b16 %v981, %v977
        %v1218 = vpack.c.b16 %v986, %v982
        %v1219 = vpack.c.b16 %v987, %v983
        %v1220 = vpack.c.b16 %v988, %v984
        %v1221 = vpack.c.b16 %v989, %v985
        %v1222 = vpack.c.b16 %v994, %v990
        %v1223 = vpack.c.b16 %v995, %v991
        %v1224 = vpack.c.b16 %v996, %v992
        %v1225 = vpack.c.b16 %v997, %v993
        %v1226 = vpack.c.b16 %v1002, %v998
        %v1227 = vpack.c.b16 %v1003, %v999
        %v1228 = vpack.c.b16 %v1004, %v1000
        %v1229 = vpack.c.b16 %v1005, %v1001
        %v1230 = vpack.c.b16 %v1010, %v1006
        %v1231 = vpack.c.b16 %v1011, %v1007
        %v1232 = vpack.c.b16 %v1012, %v1008
        %v1233 = vpack.c.b16 %v1013, %v1009
        %v1234 = vpack.c.b16 %v1018, %v1014
        %v1235 = vpack.c.b16 %v1019, %v1015
        %v1236 = vpack.c.b16 %v1020, %v1016
        %v1237 = vpack.c.b16 %v1021, %v1017
        %v1238 = vpack.c.b16 %v1026, %v1022
        %v1239 = vpack.c.b16 %v1027, %v1023
        %v1240 = vpack.c.b16 %v1028, %v1024
        %v1241 = vpack.c.b16 %v1029, %v1025
        %v1242 = vpack.c.b16 %v1034, %v1030
        %v1243 = vpack.c.b16 %v1035, %v1031
        %v1244 = vpack.c.b16 %v1036, %v1032
        %v1245 = vpack.c.b16 %v1037, %v1033
        %v1246 = vpack.c.b16 %v1042, %v1038
        %v1247 = vpack.c.b16 %v1043, %v1039
        %v1248 = vpack.c.b16 %v1044, %v1040
        %v1249 = vpack.c.b16 %v1045, %v1041
        %v1250 = vpack.c.b16 %v1050, %v1046
        %v1251 = vpack.c.b16 %v1051, %v1047
        %v1252 = vpack.c.b16 %v1052, %v1048
        %v1253 = vpack.c.b16 %v1053, %v1049
        %v1254 = vpack.c.b16 %v1058, %v1054
        %v1255 = vpack.c.b16 %v1059, %v1055
        %v1256 = vpack.c.b16 %v1060, %v1056
        %v1257 = vpack.c.b16 %v1061, %v1057
        %v1258 = vpack.c.b16 %v1066, %v1062
        %v1259 = vpack.c.b16 %v1067, %v1063
        %v1260 = vpack.c.b16 %v1068, %v1064
        %v1261 = vpack.c.b16 %v1069, %v1065
        %v1262 = vpack.c.b16 %v1074, %v1070
        %v1263 = vpack.c.b16 %v1075, %v1071
        %v1264 = vpack.c.b16 %v1076, %v1072
        %v1265 = vpack.c.b16 %v1077, %v1073
        %v1266 = vpack.c.b16 %v1082, %v1078
        %v1267 = vpack.c.b16 %v1083, %v1079
        %v1268 = vpack.c.b16 %v1084, %v1080
        %v1269 = vpack.c.b16 %v1085, %v1081
        %v1270 = vpack.c.b16 %v1090, %v1086
        %v1271 = vpack.c.b16 %v1091, %v1087
        %v1272 = vpack.c.b16 %v1092, %v1088
        %v1273 = vpack.c.b16 %v1093, %v1089
        %v1274 = vpack.c.b16 %v1098, %v1094
        %v1275 = vpack.c.b16 %v1099, %v1095
        %v1276 = vpack.c.b16 %v1100, %v1096
        %v1277 = vpack.c.b16 %v1101, %v1097
        %v1278 = vpack.c.b16 %v1106, %v1102
        %v1279 = vpack.c.b16 %v1107, %v1103
        %v1280 = vpack.c.b16 %v1108, %v1104
        %v1281 = vpack.c.b16 %v1109, %v1105
        %v1282 = vpack.c.b16 %v1114, %v1110
        %v1283 = vpack.c.b16 %v1115, %v1111
        %v1284 = vpack.c.b16 %v1116, %v1112
        %v1285 = vpack.c.b16 %v1117, %v1113
        %v1286 = vpack.c.b16 %v1122, %v1118
        %v1287 = vpack.c.b16 %v1123, %v1119
        %v1288 = vpack.c.b16 %v1124, %v1120
        %v1289 = vpack.c.b16 %v1125, %v1121
        %v1290 = vpack.c.b16 %v1130, %v1126
        %v1291 = vpack.c.b16 %v1131, %v1127
        %v1292 = vpack.c.b16 %v1132, %v1128
        %v1293 = vpack.c.b16 %v1133, %v1129
        %v1294 = vpack.c.b16 %v1138, %v1134
        %v1295 = vpack.c.b16 %v1139, %v1135
        %v1296 = vpack.c.b16 %v1140, %v1136
        %v1297 = vpack.c.b16 %v1141, %v1137
        %v1298 = vpack.c.b16 %v1146, %v1142
        %v1299 = vpack.c.b16 %v1147, %v1143
        %v1300 = vpack.c.b16 %v1148, %v1144
        %v1301 = vpack.c.b16 %v1149, %v1145
        %v1302 = vpack.c.b16 %v1154, %v1150
        %v1303 = vpack.c.b16 %v1155, %v1151
        %v1304 = vpack.c.b16 %v1156, %v1152
        %v1305 = vpack.c.b16 %v1157, %v1153
        %v1306 = vpack.c.b16 %v1162, %v1158
        %v1307 = vpack.c.b16 %v1163, %v1159
        %v1308 = vpack.c.b16 %v1164, %v1160
        %v1309 = vpack.c.b16 %v1165, %v1161
        %v1310 = vpack.c.b16 %v1170, %v1166
        %v1311 = vpack.c.b16 %v1171, %v1167
        %v1312 = vpack.c.b16 %v1172, %v1168
        %v1313 = vpack.c.b16 %v1173, %v1169
        %v1314 = vpack.c.b16 %v1178, %v1174
        %v1315 = vpack.c.b16 %v1179, %v1175
        %v1316 = vpack.c.b16 %v1180, %v1176
        %v1317 = vpack.c.b16 %v1181, %v1177
        %v1318 = vpack.c.b16 %v1186, %v1182
        %v1319 = vpack.c.b16 %v1187, %v1183
        %v1320 = vpack.c.b16 %v1188, %v1184
        %v1321 = vpack.c.b16 %v1189, %v1185
        %v1322 = vpack.c.b16 %v1194, %v1190
        %v1323 = vpack.c.b16 %v1195, %v1191
        %v1324 = vpack.c.b16 %v1196, %v1192
        %v1325 = vpack.c.b16 %v1197, %v1193
        %1454 = vmatprep.subr.bf16.mxu0 %v1227
        %1455 = vmatpush1.bf16.msra.mxu0 %v1226
        %1456 = vmatprep.subr.bf16.mxu0 %v1223
        %1457 = vmatpush1.bf16.msra.mxu0 %v1222
        %1458 = vmatprep.subr.bf16.mxu0 %v1219
        %1459 = vmatpush1.bf16.msra.mxu0 %v1218
        %1460 = vmatprep.subr.bf16.mxu0 %v1215
        %1461 = vmatpush1.bf16.msra.mxu0 %v1214
        %1462 = vmatprep.subr.bf16.mxu0 %v1211
        %1463 = vmatpush1.bf16.msra.mxu0 %v1210
        %1464 = vmatprep.subr.bf16.mxu0 %v1207
        %1465 = vmatpush1.bf16.msra.mxu0 %v1206
        %1466 = vmatprep.subr.bf16.mxu0 %v1203
        %1467 = vmatpush1.bf16.msra.mxu0 %v1202
        %1468 = vmatprep.subr.bf16.mxu0 %v1199
        %1469 = vmatpush1.bf16.msra.mxu0 %v1198
        %1470 = vmatprep.subr.bf16.mxu0 %v1259
        %1471 = vmatpush2.bf16.msra.mxu0 %v1258
        %1472 = vmatprep.subr.bf16.mxu0 %v1255
        %1473 = vmatpush2.bf16.msra.mxu0 %v1254
        %1474 = vmatprep.subr.bf16.mxu0 %v1251
        %1475 = vmatpush2.bf16.msra.mxu0 %v1250
        %1476 = vmatprep.subr.bf16.mxu0 %v1247
        %1477 = vmatpush2.bf16.msra.mxu0 %v1246
        %1478 = vmatprep.subr.bf16.mxu0 %v1243
        %1479 = vmatpush2.bf16.msra.mxu0 %v1242
        %1480 = vmatprep.subr.bf16.mxu0 %v1239
        %1481 = vmatpush2.bf16.msra.mxu0 %v1238
        %1482 = vmatprep.subr.bf16.mxu0 %v1235
        %1483 = vmatpush2.bf16.msra.mxu0 %v1234
        %1484 = vmatprep.subr.bf16.mxu0 %v1231
        %1485 = vmatpush2.bf16.msra.mxu0 %v1230
        %1486 = vmatprep.mubr.bf16.mxu0 %v661
        %1487 = vmatmul.mubr.bf16.gmra.mxu0 %v660
        %v1488 = vpop.f32.mrf.mxu0
        %v1489 = vadd.f32 %v797, %v1488
        %v1490 = vpop.f32.mrf.mxu0
        %v1491 = vadd.f32 %v801, %v1490
        %v1492 = vpop.f32.mrf.mxu0
        %v1493 = vpop.f32.mrf.mxu0
        %1494 = vdwg.mxu0
        %1495 = vmatprep.subr.bf16.mxu0 %v1291
        %1496 = vmatpush1.bf16.msra.mxu0 %v1290
        %1497 = vmatprep.subr.bf16.mxu0 %v1287
        %1498 = vmatpush1.bf16.msra.mxu0 %v1286
        %1499 = vmatprep.subr.bf16.mxu0 %v1283
        %1500 = vmatpush1.bf16.msra.mxu0 %v1282
        %1501 = vmatprep.subr.bf16.mxu0 %v1279
        %1502 = vmatpush1.bf16.msra.mxu0 %v1278
        %1503 = vmatprep.subr.bf16.mxu0 %v1275
        %1504 = vmatpush1.bf16.msra.mxu0 %v1274
        %1505 = vmatprep.subr.bf16.mxu0 %v1271
        %1506 = vmatpush1.bf16.msra.mxu0 %v1270
        %1507 = vmatprep.subr.bf16.mxu0 %v1267
        %1508 = vmatpush1.bf16.msra.mxu0 %v1266
        %1509 = vmatprep.subr.bf16.mxu0 %v1263
        %1510 = vmatpush1.bf16.msra.mxu0 %v1262
        %1511 = vmatprep.subr.bf16.mxu0 %v1323
        %1512 = vmatpush2.bf16.msra.mxu0 %v1322
        %1513 = vmatprep.subr.bf16.mxu0 %v1319
        %1514 = vmatpush2.bf16.msra.mxu0 %v1318
        %1515 = vmatprep.subr.bf16.mxu0 %v1315
        %1516 = vmatpush2.bf16.msra.mxu0 %v1314
        %1517 = vmatprep.subr.bf16.mxu0 %v1311
        %1518 = vmatpush2.bf16.msra.mxu0 %v1310
        %1519 = vmatprep.subr.bf16.mxu0 %v1307
        %1520 = vmatpush2.bf16.msra.mxu0 %v1306
        %1521 = vmatprep.subr.bf16.mxu0 %v1303
        %1522 = vmatpush2.bf16.msra.mxu0 %v1302
        %1523 = vmatprep.subr.bf16.mxu0 %v1299
        %1524 = vmatpush2.bf16.msra.mxu0 %v1298
        %1525 = vmatprep.subr.bf16.mxu0 %v1295
        %1526 = vmatpush2.bf16.msra.mxu0 %v1294
        %1527 = vmatprep.mubr.bf16.mxu0 %v663
        %1528 = vmatmul.mubr.bf16.gmra.mxu0 %v662
        %v1529 = vpop.f32.mrf.mxu0
        %v1530 = vadd.f32 %v1489, %v1529
        %v1531 = vpop.f32.mrf.mxu0
        %v1532 = vadd.f32 %v1491, %v1531
        %v1533 = vpop.f32.mrf.mxu0
        %v1534 = vpop.f32.mrf.mxu0
        %1535 = vdwg.mxu0
        %1536 = vmatprep.subr.bf16.mxu0 %v1229
        %1537 = vmatpush1.bf16.msra.mxu0 %v1228
        %1538 = vmatprep.subr.bf16.mxu0 %v1225
        %1539 = vmatpush1.bf16.msra.mxu0 %v1224
        %1540 = vmatprep.subr.bf16.mxu0 %v1221
        %1541 = vmatpush1.bf16.msra.mxu0 %v1220
        %1542 = vmatprep.subr.bf16.mxu0 %v1217
        %1543 = vmatpush1.bf16.msra.mxu0 %v1216
        %1544 = vmatprep.subr.bf16.mxu0 %v1213
        %1545 = vmatpush1.bf16.msra.mxu0 %v1212
        %1546 = vmatprep.subr.bf16.mxu0 %v1209
        %1547 = vmatpush1.bf16.msra.mxu0 %v1208
        %1548 = vmatprep.subr.bf16.mxu0 %v1205
        %1549 = vmatpush1.bf16.msra.mxu0 %v1204
        %1550 = vmatprep.subr.bf16.mxu0 %v1201
        %1551 = vmatpush1.bf16.msra.mxu0 %v1200
        %1552 = vmatprep.subr.bf16.mxu0 %v1261
        %1553 = vmatpush2.bf16.msra.mxu0 %v1260
        %1554 = vmatprep.subr.bf16.mxu0 %v1257
        %1555 = vmatpush2.bf16.msra.mxu0 %v1256
        %1556 = vmatprep.subr.bf16.mxu0 %v1253
        %1557 = vmatpush2.bf16.msra.mxu0 %v1252
        %1558 = vmatprep.subr.bf16.mxu0 %v1249
        %1559 = vmatpush2.bf16.msra.mxu0 %v1248
        %1560 = vmatprep.subr.bf16.mxu0 %v1245
        %1561 = vmatpush2.bf16.msra.mxu0 %v1244
        %1562 = vmatprep.subr.bf16.mxu0 %v1241
        %1563 = vmatpush2.bf16.msra.mxu0 %v1240
        %1564 = vmatprep.subr.bf16.mxu0 %v1237
        %1565 = vmatpush2.bf16.msra.mxu0 %v1236
        %1566 = vmatprep.subr.bf16.mxu0 %v1233
        %1567 = vmatpush2.bf16.msra.mxu0 %v1232
        %1568 = vmatprep.mubr.bf16.mxu0 %v661
        %1569 = vmatmul.mubr.bf16.gmra.mxu0 %v660
        %v1570 = vpop.f32.mrf.mxu0
        %v1571 = vadd.f32 %v805, %v1570
        %v1572 = vpop.f32.mrf.mxu0
        %v1573 = vadd.f32 %v809, %v1572
        %v1574 = vpop.f32.mrf.mxu0
        %v1575 = vpop.f32.mrf.mxu0
        %1576 = vdwg.mxu0
        %1577 = vmatprep.subr.bf16.mxu0 %v1293
        %1578 = vmatpush1.bf16.msra.mxu0 %v1292
        %1579 = vmatprep.subr.bf16.mxu0 %v1289
        %1580 = vmatpush1.bf16.msra.mxu0 %v1288
        %1581 = vmatprep.subr.bf16.mxu0 %v1285
        %1582 = vmatpush1.bf16.msra.mxu0 %v1284
        %1583 = vmatprep.subr.bf16.mxu0 %v1281
        %1584 = vmatpush1.bf16.msra.mxu0 %v1280
        %1585 = vmatprep.subr.bf16.mxu0 %v1277
        %1586 = vmatpush1.bf16.msra.mxu0 %v1276
        %1587 = vmatprep.subr.bf16.mxu0 %v1273
        %1588 = vmatpush1.bf16.msra.mxu0 %v1272
        %1589 = vmatprep.subr.bf16.mxu0 %v1269
        %1590 = vmatpush1.bf16.msra.mxu0 %v1268
        %1591 = vmatprep.subr.bf16.mxu0 %v1265
        %1592 = vmatpush1.bf16.msra.mxu0 %v1264
        %1593 = vmatprep.subr.bf16.mxu0 %v1325
        %1594 = vmatpush2.bf16.msra.mxu0 %v1324
        %1595 = vmatprep.subr.bf16.mxu0 %v1321
        %1596 = vmatpush2.bf16.msra.mxu0 %v1320
        %1597 = vmatprep.subr.bf16.mxu0 %v1317
        %1598 = vmatpush2.bf16.msra.mxu0 %v1316
        %1599 = vmatprep.subr.bf16.mxu0 %v1313
        %1600 = vmatpush2.bf16.msra.mxu0 %v1312
        %1601 = vmatprep.subr.bf16.mxu0 %v1309
        %1602 = vmatpush2.bf16.msra.mxu0 %v1308
        %1603 = vmatprep.subr.bf16.mxu0 %v1305
        %1604 = vmatpush2.bf16.msra.mxu0 %v1304
        %1605 = vmatprep.subr.bf16.mxu0 %v1301
        %1606 = vmatpush2.bf16.msra.mxu0 %v1300
        %1607 = vmatprep.subr.bf16.mxu0 %v1297
        %1608 = vmatpush2.bf16.msra.mxu0 %v1296
        %1609 = vmatprep.mubr.bf16.mxu0 %v663
        %1610 = vmatmul.mubr.bf16.gmra.mxu0 %v662
        %v1611 = vpop.f32.mrf.mxu0
        %v1612 = vadd.f32 %v1571, %v1611
        %v1613 = vpop.f32.mrf.mxu0
        %v1614 = vadd.f32 %v1573, %v1613
        %v1615 = vpop.f32.mrf.mxu0
        %v1616 = vpop.f32.mrf.mxu0
        %1617 = vdwg.mxu0
        %vm1618 = vcmp.gt.f32.partialorder %v1530, 0.0
        %vm1619 = vcmp.gt.f32.partialorder %v1532, 0.0
        %vm1620 = vcmp.gt.f32.partialorder %v1612, 0.0
        %vm1621 = vcmp.gt.f32.partialorder %v1614, 0.0
        %v1622 = vmul.f32 %v1530, 0.2
        %v1623 = vmul.f32 %v1532, 0.2
        %v1624 = vmul.f32 %v1612, 0.2
        %v1625 = vmul.f32 %v1614, 0.2
        %v1626 = vsel %vm1618, %v1530, %v1622
        %v1627 = vsel %vm1619, %v1532, %v1623
        %v1628 = vsel %vm1620, %v1612, %v1624
        %v1629 = vsel %vm1621, %v1614, %v1625
        %v1630 = vpack.c.bf16 %v1626, %v1626
        %v1631 = vpack.c.bf16 %v1627, %v1627
        %v1632 = vpack.c.bf16 %v1628, %v1628
        %v1633 = vpack.c.bf16 %v1629, %v1629
        %v1634 = vld [vmem:[#allocation10] sm:$0xf]
        %v1635 = vld [vmem:[#allocation10 + $0x4] sm:$0xf]
        %v1636 = vld [vmem:[#allocation10 + $0x8] sm:$0xf]
        %v1637 = vld [vmem:[#allocation10 + $0xc] sm:$0xf]
        %v1638 = vld [vmem:[#allocation10 + $0x10] sm:$0xf]
        %v1639 = vld [vmem:[#allocation10 + $0x14] sm:$0xf]
        %v1640 = vld [vmem:[#allocation10 + $0x18] sm:$0xf]
        %v1641 = vld [vmem:[#allocation10 + $0x1c] sm:$0xf]
        %v1642 = vld [vmem:[#allocation10 + $0x20] sm:$0xf]
        %v1643 = vld [vmem:[#allocation10 + $0x24] sm:$0xf]
        %v1644 = vld [vmem:[#allocation10 + $0x28] sm:$0xf]
        %v1645 = vld [vmem:[#allocation10 + $0x2c] sm:$0xf]
        %v1646 = vld [vmem:[#allocation10 + $0x30] sm:$0xf]
        %v1647 = vld [vmem:[#allocation10 + $0x34] sm:$0xf]
        %v1648 = vld [vmem:[#allocation10 + $0x38] sm:$0xf]
        %v1649 = vld [vmem:[#allocation10 + $0x3c] sm:$0xf]
        %v1650 = vld [vmem:[#allocation10 + $0x40] sm:$0xf]
        %v1651 = vld [vmem:[#allocation10 + $0x44] sm:$0xf]
        %v1652 = vld [vmem:[#allocation10 + $0x48] sm:$0xf]
        %v1653 = vld [vmem:[#allocation10 + $0x4c] sm:$0xf]
        %v1654 = vld [vmem:[#allocation10 + $0x50] sm:$0xf]
        %v1655 = vld [vmem:[#allocation10 + $0x54] sm:$0xf]
        %v1656 = vld [vmem:[#allocation10 + $0x58] sm:$0xf]
        %v1657 = vld [vmem:[#allocation10 + $0x5c] sm:$0xf]
        %v1658 = vld [vmem:[#allocation10 + $0x60] sm:$0xf]
        %v1659 = vld [vmem:[#allocation10 + $0x64] sm:$0xf]
        %v1660 = vld [vmem:[#allocation10 + $0x68] sm:$0xf]
        %v1661 = vld [vmem:[#allocation10 + $0x6c] sm:$0xf]
        %v1662 = vld [vmem:[#allocation10 + $0x70] sm:$0xf]
        %v1663 = vld [vmem:[#allocation10 + $0x74] sm:$0xf]
        %v1664 = vld [vmem:[#allocation10 + $0x78] sm:$0xf]
        %v1665 = vld [vmem:[#allocation10 + $0x7c] sm:$0xf]
        %v1666 = vld [vmem:[#allocation10 + $0x80] sm:$0xf]
        %v1667 = vld [vmem:[#allocation10 + $0x84] sm:$0xf]
        %v1668 = vld [vmem:[#allocation10 + $0x88] sm:$0xf]
        %v1669 = vld [vmem:[#allocation10 + $0x8c] sm:$0xf]
        %v1670 = vld [vmem:[#allocation10 + $0x90] sm:$0xf]
        %v1671 = vld [vmem:[#allocation10 + $0x94] sm:$0xf]
        %v1672 = vld [vmem:[#allocation10 + $0x98] sm:$0xf]
        %v1673 = vld [vmem:[#allocation10 + $0x9c] sm:$0xf]
        %v1674 = vld [vmem:[#allocation10 + $0xa0] sm:$0xf]
        %v1675 = vld [vmem:[#allocation10 + $0xa4] sm:$0xf]
        %v1676 = vld [vmem:[#allocation10 + $0xa8] sm:$0xf]
        %v1677 = vld [vmem:[#allocation10 + $0xac] sm:$0xf]
        %v1678 = vld [vmem:[#allocation10 + $0xb0] sm:$0xf]
        %v1679 = vld [vmem:[#allocation10 + $0xb4] sm:$0xf]
        %v1680 = vld [vmem:[#allocation10 + $0xb8] sm:$0xf]
        %v1681 = vld [vmem:[#allocation10 + $0xbc] sm:$0xf]
        %v1682 = vld [vmem:[#allocation10 + $0xc0] sm:$0xf]
        %v1683 = vld [vmem:[#allocation10 + $0xc4] sm:$0xf]
        %v1684 = vld [vmem:[#allocation10 + $0xc8] sm:$0xf]
        %v1685 = vld [vmem:[#allocation10 + $0xcc] sm:$0xf]
        %v1686 = vld [vmem:[#allocation10 + $0xd0] sm:$0xf]
        %v1687 = vld [vmem:[#allocation10 + $0xd4] sm:$0xf]
        %v1688 = vld [vmem:[#allocation10 + $0xd8] sm:$0xf]
        %v1689 = vld [vmem:[#allocation10 + $0xdc] sm:$0xf]
        %v1690 = vld [vmem:[#allocation10 + $0xe0] sm:$0xf]
        %v1691 = vld [vmem:[#allocation10 + $0xe4] sm:$0xf]
        %v1692 = vld [vmem:[#allocation10 + $0xe8] sm:$0xf]
        %v1693 = vld [vmem:[#allocation10 + $0xec] sm:$0xf]
        %v1694 = vld [vmem:[#allocation10 + $0xf0] sm:$0xf]
        %v1695 = vld [vmem:[#allocation10 + $0xf4] sm:$0xf]
        %v1696 = vld [vmem:[#allocation10 + $0xf8] sm:$0xf]
        %v1697 = vld [vmem:[#allocation10 + $0xfc] sm:$0xf]
        %v1698 = vld [vmem:[%s6] sm:$0x1]
        %v1700 = vlaneseq
        %v1701 = vshrl.u32 %v1700, 7
        %v1702 = vsub.s32 0, %v1701
        %v1703 = vrot.slane %v1698, %v1702
        %v1769 = vunpack.c.l.b16 %v1634
        %v1770 = vunpack.c.l.b16 %v1635
        %v1771 = vunpack.c.l.b16 %v1636
        %v1772 = vunpack.c.l.b16 %v1637
        %v1773 = vunpack.c.l.b16 %v1638
        %v1774 = vunpack.c.l.b16 %v1639
        %v1775 = vunpack.c.l.b16 %v1640
        %v1776 = vunpack.c.l.b16 %v1641
        %v1777 = vunpack.c.l.b16 %v1642
        %v1778 = vunpack.c.l.b16 %v1643
        %v1779 = vunpack.c.l.b16 %v1644
        %v1780 = vunpack.c.l.b16 %v1645
        %v1781 = vunpack.c.l.b16 %v1646
        %v1782 = vunpack.c.l.b16 %v1647
        %v1783 = vunpack.c.l.b16 %v1648
        %v1784 = vunpack.c.l.b16 %v1649
        %v1785 = vunpack.c.l.b16 %v1650
        %v1786 = vunpack.c.l.b16 %v1651
        %v1787 = vunpack.c.l.b16 %v1652
        %v1788 = vunpack.c.l.b16 %v1653
        %v1789 = vunpack.c.l.b16 %v1654
        %v1790 = vunpack.c.l.b16 %v1655
        %v1791 = vunpack.c.l.b16 %v1656
        %v1792 = vunpack.c.l.b16 %v1657
        %v1793 = vunpack.c.l.b16 %v1658
        %v1794 = vunpack.c.l.b16 %v1659
        %v1795 = vunpack.c.l.b16 %v1660
        %v1796 = vunpack.c.l.b16 %v1661
        %v1797 = vunpack.c.l.b16 %v1662
        %v1798 = vunpack.c.l.b16 %v1663
        %v1799 = vunpack.c.l.b16 %v1664
        %v1800 = vunpack.c.l.b16 %v1665
        %v1801 = vunpack.c.l.b16 %v1666
        %v1802 = vunpack.c.l.b16 %v1667
        %v1803 = vunpack.c.l.b16 %v1668
        %v1804 = vunpack.c.l.b16 %v1669
        %v1805 = vunpack.c.l.b16 %v1670
        %v1806 = vunpack.c.l.b16 %v1671
        %v1807 = vunpack.c.l.b16 %v1672
        %v1808 = vunpack.c.l.b16 %v1673
        %v1809 = vunpack.c.l.b16 %v1674
        %v1810 = vunpack.c.l.b16 %v1675
        %v1811 = vunpack.c.l.b16 %v1676
        %v1812 = vunpack.c.l.b16 %v1677
        %v1813 = vunpack.c.l.b16 %v1678
        %v1814 = vunpack.c.l.b16 %v1679
        %v1815 = vunpack.c.l.b16 %v1680
        %v1816 = vunpack.c.l.b16 %v1681
        %v1817 = vunpack.c.l.b16 %v1682
        %v1818 = vunpack.c.l.b16 %v1683
        %v1819 = vunpack.c.l.b16 %v1684
        %v1820 = vunpack.c.l.b16 %v1685
        %v1821 = vunpack.c.l.b16 %v1686
        %v1822 = vunpack.c.l.b16 %v1687
        %v1823 = vunpack.c.l.b16 %v1688
        %v1824 = vunpack.c.l.b16 %v1689
        %v1825 = vunpack.c.l.b16 %v1690
        %v1826 = vunpack.c.l.b16 %v1691
        %v1827 = vunpack.c.l.b16 %v1692
        %v1828 = vunpack.c.l.b16 %v1693
        %v1829 = vunpack.c.l.b16 %v1694
        %v1830 = vunpack.c.l.b16 %v1695
        %v1831 = vunpack.c.l.b16 %v1696
        %v1832 = vunpack.c.l.b16 %v1697
        %v1833 = vpack.c.b16 %v1770, %v1769
        %v1834 = vpack.c.b16 %v1772, %v1771
        %v1835 = vpack.c.b16 %v1774, %v1773
        %v1836 = vpack.c.b16 %v1776, %v1775
        %v1837 = vpack.c.b16 %v1778, %v1777
        %v1838 = vpack.c.b16 %v1780, %v1779
        %v1839 = vpack.c.b16 %v1782, %v1781
        %v1840 = vpack.c.b16 %v1784, %v1783
        %v1841 = vpack.c.b16 %v1786, %v1785
        %v1842 = vpack.c.b16 %v1788, %v1787
        %v1843 = vpack.c.b16 %v1790, %v1789
        %v1844 = vpack.c.b16 %v1792, %v1791
        %v1845 = vpack.c.b16 %v1794, %v1793
        %v1846 = vpack.c.b16 %v1796, %v1795
        %v1847 = vpack.c.b16 %v1798, %v1797
        %v1848 = vpack.c.b16 %v1800, %v1799
        %v1849 = vpack.c.b16 %v1802, %v1801
        %v1850 = vpack.c.b16 %v1804, %v1803
        %v1851 = vpack.c.b16 %v1806, %v1805
        %v1852 = vpack.c.b16 %v1808, %v1807
        %v1853 = vpack.c.b16 %v1810, %v1809
        %v1854 = vpack.c.b16 %v1812, %v1811
        %v1855 = vpack.c.b16 %v1814, %v1813
        %v1856 = vpack.c.b16 %v1816, %v1815
        %v1857 = vpack.c.b16 %v1818, %v1817
        %v1858 = vpack.c.b16 %v1820, %v1819
        %v1859 = vpack.c.b16 %v1822, %v1821
        %v1860 = vpack.c.b16 %v1824, %v1823
        %v1861 = vpack.c.b16 %v1826, %v1825
        %v1862 = vpack.c.b16 %v1828, %v1827
        %v1863 = vpack.c.b16 %v1830, %v1829
        %v1864 = vpack.c.b16 %v1832, %v1831
        %1897 = vmatprep.subr.bf16.mxu0 0
        %1898 = vmatpush1.bf16.msra.mxu0 %v1840
        %1899 = vmatprep.subr.bf16.mxu0 0
        %1900 = vmatpush1.bf16.msra.mxu0 %v1839
        %1901 = vmatprep.subr.bf16.mxu0 0
        %1902 = vmatpush1.bf16.msra.mxu0 %v1838
        %1903 = vmatprep.subr.bf16.mxu0 0
        %1904 = vmatpush1.bf16.msra.mxu0 %v1837
        %1905 = vmatprep.subr.bf16.mxu0 0
        %1906 = vmatpush1.bf16.msra.mxu0 %v1836
        %1907 = vmatprep.subr.bf16.mxu0 0
        %1908 = vmatpush1.bf16.msra.mxu0 %v1835
        %1909 = vmatprep.subr.bf16.mxu0 0
        %1910 = vmatpush1.bf16.msra.mxu0 %v1834
        %1911 = vmatprep.subr.bf16.mxu0 0
        %1912 = vmatpush1.bf16.msra.mxu0 %v1833
        %1913 = vmatprep.subr.bf16.mxu0 0
        %1914 = vmatpush2.bf16.msra.mxu0 %v1848
        %1915 = vmatprep.subr.bf16.mxu0 0
        %1916 = vmatpush2.bf16.msra.mxu0 %v1847
        %1917 = vmatprep.subr.bf16.mxu0 0
        %1918 = vmatpush2.bf16.msra.mxu0 %v1846
        %1919 = vmatprep.subr.bf16.mxu0 0
        %1920 = vmatpush2.bf16.msra.mxu0 %v1845
        %1921 = vmatprep.subr.bf16.mxu0 0
        %1922 = vmatpush2.bf16.msra.mxu0 %v1844
        %1923 = vmatprep.subr.bf16.mxu0 0
        %1924 = vmatpush2.bf16.msra.mxu0 %v1843
        %1925 = vmatprep.subr.bf16.mxu0 0
        %1926 = vmatpush2.bf16.msra.mxu0 %v1842
        %1927 = vmatprep.subr.bf16.mxu0 0
        %1928 = vmatpush2.bf16.msra.mxu0 %v1841
        %1929 = vmatprep.mubr.bf16.mxu0 %v1631
        %1930 = vmatmul.mubr.bf16.gmra.mxu0 %v1630
        %v1931 = vpop.f32.mrf.mxu0
        %v1932 = vadd.f32 %v1703, %v1931
        %v1933 = vpop.f32.mrf.mxu0
        %v1934 = vpop.f32.mrf.mxu0
        %v1935 = vpop.f32.mrf.mxu0
        %1936 = vdwg.mxu0
        %1937 = vmatprep.subr.bf16.mxu0 0
        %1938 = vmatpush1.bf16.msra.mxu0 %v1856
        %1939 = vmatprep.subr.bf16.mxu0 0
        %1940 = vmatpush1.bf16.msra.mxu0 %v1855
        %1941 = vmatprep.subr.bf16.mxu0 0
        %1942 = vmatpush1.bf16.msra.mxu0 %v1854
        %1943 = vmatprep.subr.bf16.mxu0 0
        %1944 = vmatpush1.bf16.msra.mxu0 %v1853
        %1945 = vmatprep.subr.bf16.mxu0 0
        %1946 = vmatpush1.bf16.msra.mxu0 %v1852
        %1947 = vmatprep.subr.bf16.mxu0 0
        %1948 = vmatpush1.bf16.msra.mxu0 %v1851
        %1949 = vmatprep.subr.bf16.mxu0 0
        %1950 = vmatpush1.bf16.msra.mxu0 %v1850
        %1951 = vmatprep.subr.bf16.mxu0 0
        %1952 = vmatpush1.bf16.msra.mxu0 %v1849
        %1953 = vmatprep.subr.bf16.mxu0 0
        %1954 = vmatpush2.bf16.msra.mxu0 %v1864
        %1955 = vmatprep.subr.bf16.mxu0 0
        %1956 = vmatpush2.bf16.msra.mxu0 %v1863
        %1957 = vmatprep.subr.bf16.mxu0 0
        %1958 = vmatpush2.bf16.msra.mxu0 %v1862
        %1959 = vmatprep.subr.bf16.mxu0 0
        %1960 = vmatpush2.bf16.msra.mxu0 %v1861
        %1961 = vmatprep.subr.bf16.mxu0 0
        %1962 = vmatpush2.bf16.msra.mxu0 %v1860
        %1963 = vmatprep.subr.bf16.mxu0 0
        %1964 = vmatpush2.bf16.msra.mxu0 %v1859
        %1965 = vmatprep.subr.bf16.mxu0 0
        %1966 = vmatpush2.bf16.msra.mxu0 %v1858
        %1967 = vmatprep.subr.bf16.mxu0 0
        %1968 = vmatpush2.bf16.msra.mxu0 %v1857
        %1969 = vmatprep.mubr.bf16.mxu0 %v1633
        %1970 = vmatmul.mubr.bf16.gmra.mxu0 %v1632
        %v1971 = vpop.f32.mrf.mxu0
        %v1972 = vadd.f32 %v1932, %v1971
        %v1973 = vpop.f32.mrf.mxu0
        %v1974 = vpop.f32.mrf.mxu0
        %v1975 = vpop.f32.mrf.mxu0
        %1976 = vdwg.mxu0
        %vm1977 = vcmp.gt.f32.partialorder %v1972, 0.0
        %v1978 = vmul.f32 %v1972, 0.2
        %v1979 = vsel %vm1977, %v1972, %v1978
        %1980 = vst [vmem:[%s349] sm:$0xff] %v1979
        %s1981 = sand.u32 %s186, 1
        %s1982 = scalar_lea.sflag [#allocation4], %s1981
        %s1983 = sand.u32 %s186, 1
        %s1984 = smul.addr %s1983, 8
        %s1985 = scalar_lea.vmem [#allocation11], %s1984
        // Predicated region
        $region69: #{tpu_custom_call.1} parent=47 // pred_check
          %p1986 = pneg %p196
        $region70: #{tpu_custom_call.1} parent=47 // pred_check_branch
          %1988 = sbr.rel (%p1986) target = $region72
        $region71: #{tpu_custom_call.1} parent=47 // pred_region
          %s1990 = ssub.s32 128, 128
          %1991 = vsyncadd %s1982, %s1990
          %s1992 = smul.addr %s26, 128
          %s1993 = scalar_lea.hbm %s7, %s1992
          %s1995 = sshll.u32 %s1985, 4
          %s1996 = int_to_ptr.vmem [resolvable:$true] %s1995
          %1998 = dma.vmem_to_hbm [thread:$0]  %s1996, 128, %s1993, %s1982
        $region72: #{tpu_custom_call.1} parent=47 // pred_fallthru
          _
      $region48: #{tpu_custom_call.1} parent=5 // pred_fallthru
        _
      %p1999 = scmp.le.s32.totalorder 2, %s21
      // Predicated region
      $region73: #{tpu_custom_call.1} parent=5 // pred_check
        %p2000 = pneg %p1999
      $region74: #{tpu_custom_call.1} parent=5 // pred_check_branch
        %2002 = sbr.rel (%p2000) target = $region76
      $region75: #{tpu_custom_call.1} parent=5 // pred_region
        %s2003 = ssub.s32 %s21, 2
        // Predicated region
        $region77: #{tpu_custom_call.1} parent=75 // pred_check
          %p2004 = pneg %p202
        $region78: #{tpu_custom_call.1} parent=75 // pred_check_branch
          %2006 = sbr.rel (%p2004) target = $region80
        $region79: #{tpu_custom_call.1} parent=75 // pred_region
          %s2007 = sand.u32 %s187, 1
          %s2008 = scalar_lea.sflag [#allocation4], %s2007
          %s2009 = sand.u32 %s187, 1
          %s2010 = smul.addr %s2009, 8
          %s2011 = scalar_lea.vmem [#allocation11], %s2010
          %2012 = dma.done %s2008, 128
        $region80: #{tpu_custom_call.1} parent=75 // pred_fallthru
          _
      $region76: #{tpu_custom_call.1} parent=5 // pred_fallthru
        _
    $region6: #{tpu_custom_call.1} parent=1 // loop_footer
      %s25 = sadd.s32 1, %s21
    $region7: #{tpu_custom_call.1} parent=1 // loop_footer_branch
      %20 = sbr.rel target = $region3
    $region8: #{tpu_custom_call.1} parent=1 // loop_exit
      _
    %2013 = vsyncpa [#allocation3], 1
    %s2014 = scalar_lea.sflag [#allocation3], 1
    %2015 = vsyncpa %s2014, 1
    %2016 = vsyncpa [#allocation6], 1
    %2017 = vsyncpa [#allocation9], 1
    %2018 = vsyncpa [#allocation4], 1
    %s2019 = scalar_lea.sflag [#allocation4], 1
    %2020 = vsyncpa %s2019, 1

</llo_original>
